<compile_context>
chip_gen: v6e
topology: v6e:2x2x1
jax: 0.10.0
libtpu: 0.0.40
codegen_flags: <defaults>
</compile_context>

<pallas_src>
import functools

import jax
import jax.numpy as jnp
from jax.experimental import pallas as pl
from jax.experimental.pallas import tpu as pltpu


def _round_up(x: int, m: int) -> int:
    return (x + m - 1) // m * m


def _ceil_div(a: int, b: int) -> int:
    return -(-a // b)


# ---------------------------------------------------------------------------
# Optional single-buffering of grid-invariant operands (probed once, safe fallback).
# ---------------------------------------------------------------------------
_BUFFERED_OK = None


def _probe_buffered_support() -> bool:
    try:
        const_spec = pl.BlockSpec((8, 128), lambda i: (0, 0),
                                  pipeline_mode=pl.Buffered(1))

        def _k(x_ref, w_ref, o_ref):
            o_ref[...] = x_ref[...] + w_ref[...]

        fn = pl.pallas_call(
            _k,
            out_shape=jax.ShapeDtypeStruct((16, 128), jnp.float32),
            grid_spec=pltpu.PrefetchScalarGridSpec(
                num_scalar_prefetch=0,
                grid=(2,),
                in_specs=[pl.BlockSpec((8, 128), lambda i: (i, 0)), const_spec],
                out_specs=pl.BlockSpec((8, 128), lambda i: (i, 0)),
            ),
        )
        jax.jit(fn).lower(
            jax.ShapeDtypeStruct((16, 128), jnp.float32),
            jax.ShapeDtypeStruct((8, 128), jnp.float32),
        ).compile()
        return True
    except Exception:
        return False


def _const_spec(block_shape, index_map):
    """BlockSpec for a grid-invariant operand; single-buffered when supported."""
    global _BUFFERED_OK
    if _BUFFERED_OK is None:
        _BUFFERED_OK = _probe_buffered_support()
    if _BUFFERED_OK:
        return pl.BlockSpec(block_shape, index_map, pipeline_mode=pl.Buffered(1))
    return pl.BlockSpec(block_shape, index_map)


def _vmem_limit_bytes(block_bytes: int) -> int:
    # 2x the per-step working set + headroom, capped well below v7x's 64 MiB physical
    # VMEM (v5e/v6e have 128 MiB physical, so the cap is harmless there).
    return int(min(48 << 20, max(32 << 20, 2 * block_bytes + (8 << 20))))


# ---------------------------------------------------------------------------
# Kernel 1: fused temporal conv (1, kw) + bias + ReLU + MaxPool residual + skip + LN.
# Works in the flattened (rows = t * n_pad + n, F) feature layout, F on lanes.
# ---------------------------------------------------------------------------
def _tds_conv_block_kernel(x_ref, xh_ref, w_ref, b_ref, g_ref, bb_ref, o_ref, *,
                           kernel_width: int, rows_per_step: int, eps: float):
    """x_ref  : (t_blk*n_pad, F) input rows of time-block j
       xh_ref : (t_blk*n_pad, F) input rows of time-block j+1 (only first (kw-1)*n_pad used)
       w_ref  : (kw*F, F) per-tap channel mixing expanded to block-structured (F, F)
       o_ref  : (t_blk*n_pad, F) output rows of time-block j"""
    kw = kernel_width
    npad = rows_per_step
    r = o_ref.shape[0]
    f = o_ref.shape[1]

    if kw > 1:
        window = jnp.concatenate([x_ref[...], xh_ref[0:(kw - 1) * npad]], axis=0)
    else:
        window = x_ref[...]

    xk = window[0:r]
    acc = jnp.dot(xk, w_ref[0:f], preferred_element_type=jnp.float32)
    pool = xk                                           # max-pool in native dtype (exact)
    for k in range(1, kw):                              # kw is static -> unrolled taps
        xk = window[k * npad:k * npad + r]
        acc = acc + jnp.dot(xk, w_ref[k * f:(k + 1) * f],
                            preferred_element_type=jnp.float32)
        pool = jnp.maximum(pool, xk)

    # ReLU(conv + bias) + MaxPool residual + skip.  The skip inputs[-T_out:] is exactly
    # the last tap (input time t + kw - 1), i.e. the final `xk` of the loop.
    y = jnp.maximum(acc + b_ref[...].astype(jnp.float32), 0.0)
    y = y + pool.astype(jnp.float32) + xk.astype(jnp.float32)

    mean = jnp.mean(y, axis=-1, keepdims=True)
    c = y - mean
    var = jnp.mean(c * c, axis=-1, keepdims=True)
    out = c * jax.lax.rsqrt(var + eps) * g_ref[...].astype(jnp.float32) \
        + bb_ref[...].astype(jnp.float32)
    o_ref[...] = out.astype(o_ref.dtype)


# ---------------------------------------------------------------------------
# Kernel 2: fused Linear -> ReLU -> Linear -> +residual -> LayerNorm over (rows, F).
# ---------------------------------------------------------------------------
def _tds_fc_block_kernel(x_ref, w1_ref, b1_ref, w2_ref, b2_ref, g_ref, bb_ref, o_ref, *,
                         eps: float):
    x = x_ref[...]
    h = jnp.dot(x, w1_ref[...], preferred_element_type=jnp.float32)
    h = jnp.maximum(h + b1_ref[...].astype(jnp.float32), 0.0)
    # Feed the MXU in the input dtype (exact for f32; bf16 inputs round the hidden
    # activations, matching a bf16 deployment of the module).
    y = jnp.dot(h.astype(x.dtype), w2_ref[...], preferred_element_type=jnp.float32)
    y = y + b2_ref[...].astype(jnp.float32) + x.astype(jnp.float32)     # residual
    mean = jnp.mean(y, axis=-1, keepdims=True)
    c = y - mean
    var = jnp.mean(c * c, axis=-1, keepdims=True)
    out = c * jax.lax.rsqrt(var + eps) * g_ref[...].astype(jnp.float32) \
        + bb_ref[...].astype(jnp.float32)
    o_ref[...] = out.astype(o_ref.dtype)


# ---------------------------------------------------------------------------
# Wrappers
# ---------------------------------------------------------------------------
def residual_tds_conv2d_block(inputs, conv_w, conv_b, gamma, beta, *,
                              channels: int, kernel_width: int,
                              eps: float = 1e-5, time_tile: int = 128):
    """inputs: (T_in, N, F) with F = channels * width.
    conv_w: (kw, ch_in, ch_out) == PyTorch conv2d.weight[o, i, 0, k] transposed to [k, i, o].
    conv_b: (channels,). gamma/beta: (F,). Returns (T_out, N, F), T_out = T_in - kw + 1."""
    T_in, N, F = inputs.shape
    assert F % channels == 0, "channels must divide num_features"
    width = F // channels
    kw = kernel_width
    T_out = T_in - kw + 1
    assert T_out >= 1, "sequence too short for kernel_width"

    # Fold the (channels x channels) per-tap mixing into a block-structured (F, F)
    # weight so the conv is a lane-dense (rows, F) x (F, F) MXU matmul (K = N = F).
    eye_w = jnp.eye(width, dtype=conv_w.dtype)
    w_exp = jnp.einsum("kio,wv->kiwov", conv_w, eye_w).reshape(kw * F, F)
    b_exp = jnp.repeat(conv_b, width).reshape(1, F)

    n_pad = _round_up(N, 8)                          # sublane-dense rows per time step
    itemsize = inputs.dtype.itemsize
    t_cap = max(1, (4 << 20) // max(1, n_pad * F * itemsize))   # ~4 MiB per x block
    # >= kw-1 so the halo fits in one following block; <= ceil(T_out/2) so the parallel
    # grid axis has length >= 2 whenever possible (keeps both v7x TensorCores busy).
    t_blk = max(kw - 1, 1, min(time_tile, _ceil_div(T_out, 2), t_cap))
    T_out_p = _round_up(T_out, t_blk)
    T_in_pad = T_out_p + t_blk                       # halo block j+1 always exists
    num_t = T_out_p // t_blk

    x = inputs
    if T_in_pad != T_in or n_pad != N:
        x = jnp.pad(x, ((0, T_in_pad - T_in), (0, n_pad - N), (0, 0)))
    x2d = x.reshape(T_in_pad * n_pad, F)             # row = t * n_pad + n (free reshape)

    blk_rows = t_blk * n_pad
    w_item = w_exp.dtype.itemsize
    block_bytes = 3 * blk_rows * F * itemsize + (kw * F * F + 3 * F) * w_item
    kernel = functools.partial(_tds_conv_block_kernel, kernel_width=kw,
                               rows_per_step=n_pad, eps=eps)
    out2d = pl.pallas_call(
        kernel,
        out_shape=jax.ShapeDtypeStruct((T_out_p * n_pad, F), inputs.dtype),
        grid_spec=pltpu.PrefetchScalarGridSpec(
            num_scalar_prefetch=0,
            grid=(num_t,),
            in_specs=[
                pl.BlockSpec((blk_rows, F), lambda j: (j, 0)),       # x, time-block j
                pl.BlockSpec((blk_rows, F), lambda j: (j + 1, 0)),   # x halo, block j+1
                _const_spec((kw * F, F), lambda j: (0, 0)),          # expanded weights
                _const_spec((1, F), lambda j: (0, 0)),               # expanded bias
                _const_spec((1, F), lambda j: (0, 0)),               # gamma
                _const_spec((1, F), lambda j: (0, 0)),               # beta
            ],
            out_specs=pl.BlockSpec((blk_rows, F), lambda j: (j, 0)),
        ),
        compiler_params=pltpu.CompilerParams(
            dimension_semantics=("parallel",),
            vmem_limit_bytes=_vmem_limit_bytes(block_bytes)),
        cost_estimate=pl.CostEstimate(
            flops=2 * T_out_p * n_pad * F * F * kw,
            transcendentals=T_out_p * n_pad,
            bytes_accessed=(2 * T_in_pad + T_out_p) * n_pad * F * itemsize
            + (kw * F * F + 3 * F) * w_item),
    )(x2d, x2d, w_exp, b_exp, gamma.reshape(1, F), beta.reshape(1, F))

    out = out2d.reshape(T_out_p, n_pad, F)
    return out[:T_out, :N, :]


def residual_tds_fc_block(inputs, w1, b1, w2, b2, gamma, beta, *,
                          eps: float = 1e-5, tile_rows: int = 512):
    """inputs: (T, N, F). w1/w2: (F, F) stored (in, out). Returns (T, N, F)."""
    T, N, F = inputs.shape
    rows = T * N
    x2d = inputs.reshape(rows, F)
    # Large row tiles amortize the per-grid-step overhead, but cap at ceil(rows/2) so the
    # parallel grid axis has length >= 2 whenever rows >= 16 (both v7x TensorCores busy).
    tile = _round_up(max(8, min(tile_rows, _ceil_div(rows, 2))), 8)
    rows_p = _round_up(rows, tile)
    if rows_p != rows:
        x2d = jnp.pad(x2d, ((0, rows_p - rows), (0, 0)))

    itemsize = inputs.dtype.itemsize
    block_bytes = 2 * tile * F * itemsize + (2 * F * F + 5 * F) * w1.dtype.itemsize
    out2d = pl.pallas_call(
        functools.partial(_tds_fc_block_kernel, eps=eps),
        out_shape=jax.ShapeDtypeStruct((rows_p, F), inputs.dtype),
        grid_spec=pltpu.PrefetchScalarGridSpec(
            num_scalar_prefetch=0,
            grid=(rows_p // tile,),
            in_specs=[
                pl.BlockSpec((tile, F), lambda i: (i, 0)),   # x tile
                _const_spec((F, F), lambda i: (0, 0)),       # w1 (grid-invariant)
                _const_spec((1, F), lambda i: (0, 0)),       # b1
                _const_spec((F, F), lambda i: (0, 0)),       # w2 (grid-invariant)
                _const_spec((1, F), lambda i: (0, 0)),       # b2
                _const_spec((1, F), lambda i: (0, 0)),       # gamma
                _const_spec((1, F), lambda i: (0, 0)),       # beta
            ],
            out_specs=pl.BlockSpec((tile, F), lambda i: (i, 0)),
        ),
        compiler_params=pltpu.CompilerParams(
            dimension_semantics=("parallel",),
            vmem_limit_bytes=_vmem_limit_bytes(block_bytes)),
        cost_estimate=pl.CostEstimate(
            flops=4 * rows_p * F * F,
            transcendentals=rows_p,
            bytes_accessed=(2 * rows_p * F + 2 * F * F + 5 * F) * itemsize),
    )(x2d, w1, b1.reshape(1, F), w2, b2.reshape(1, F),
      gamma.reshape(1, F), beta.reshape(1, F))
    return out2d[:rows].reshape(T, N, F)


def residual_tds_conv_encoder(inputs, params, *, block_channels, kernel_width):
    """inputs: (T, N, num_features); params: one dict per entry of block_channels."""
    x = inputs
    for p, channels in zip(params, block_channels):
        x = residual_tds_conv2d_block(
            x, p["conv_w"], p["conv_b"], p["conv_gamma"], p["conv_beta"],
            channels=channels, kernel_width=kernel_width)
        x = residual_tds_fc_block(
            x, p["fc_w1"], p["fc_b1"], p["fc_w2"], p["fc_b2"],
            p["fc_gamma"], p["fc_beta"])
    return x


# ---------------------------------------------------------------------------
# Pure-JAX reference (mirrors the PyTorch forward)
# ---------------------------------------------------------------------------
def _conv_block_reference(x, conv_w, conv_b, gamma, beta, *, channels, kernel_width,
                          eps=1e-5):
    T_in, N, F = x.shape
    width = F // channels
    t_out = T_in - kernel_width + 1
    x4 = x.reshape(T_in, N, channels, width).astype(jnp.float32)
    conv = jnp.zeros((t_out, N, channels, width), jnp.float32)
    for k in range(kernel_width):
        conv = conv + jnp.einsum("tniw,io->tnow", x4[k:k + t_out],
                                 conv_w[k].astype(jnp.float32))
    conv = jnp.maximum(conv + conv_b.astype(jnp.float32)[None, None, :, None], 0.0)
    pool = x4[0:t_out]
    for k in range(1, kernel_width):
        pool = jnp.maximum(pool, x4[k:k + t_out])
    y = (conv + pool).reshape(t_out, N, F) + x[T_in - t_out:].astype(jnp.float32)
    mean = y.mean(axis=-1, keepdims=True)
    var = ((y - mean) ** 2).mean(axis=-1, keepdims=True)
    return (y - mean) * jax.lax.rsqrt(var + eps) * gamma + beta


def _fc_block_reference(x, w1, b1, w2, b2, gamma, beta, eps=1e-5):
    xf = x.astype(jnp.float32)
    h = jnp.maximum(xf @ w1 + b1, 0.0)
    y = h @ w2 + b2 + xf
    mean = y.mean(axis=-1, keepdims=True)
    var = ((y - mean) ** 2).mean(axis=-1, keepdims=True)
    return (y - mean) * jax.lax.rsqrt(var + eps) * gamma + beta


def _encoder_reference(inputs, params, *, block_channels, kernel_width):
    x = inputs
    for p, channels in zip(params, block_channels):
        x = _conv_block_reference(x, p["conv_w"], p["conv_b"],
                                  p["conv_gamma"], p["conv_beta"],
                                  channels=channels, kernel_width=kernel_width)
        x = _fc_block_reference(x, p["fc_w1"], p["fc_b1"], p["fc_w2"], p["fc_b2"],
                                p["fc_gamma"], p["fc_beta"])
    return x


if __name__ == "__main__":
    # Small demo shapes consistent with the module: (T, N, num_features), with
    # num_features = 128 so the feature axis is lane-dense, and two TDS blocks.
    T, N, F = 16, 2, 128
    block_channels = (4, 4)          # each must divide num_features
    kernel_width = 4

    key = jax.random.PRNGKey(0)
    params = []
    for channels in block_channels:
        key, k1, k2, k3, k4, k5, k6 = jax.random.split(key, 7)
        cscale = 1.0 / (channels * kernel_width) ** 0.5
        fscale = 1.0 / F ** 0.5
        params.append(dict(
            conv_w=jax.random.uniform(k1, (kernel_width, channels, channels),
                                      jnp.float32, -cscale, cscale),
            conv_b=jax.random.uniform(k2, (channels,), jnp.float32, -cscale, cscale),
            conv_gamma=jnp.ones((F,), jnp.float32),
            conv_beta=jnp.zeros((F,), jnp.float32),
            fc_w1=jax.random.uniform(k3, (F, F), jnp.float32, -fscale, fscale),
            fc_b1=jax.random.uniform(k4, (F,), jnp.float32, -fscale, fscale),
            fc_w2=jax.random.uniform(k5, (F, F), jnp.float32, -fscale, fscale),
            fc_b2=jax.random.uniform(k6, (F,), jnp.float32, -fscale, fscale),
            fc_gamma=jnp.ones((F,), jnp.float32),
            fc_beta=jnp.zeros((F,), jnp.float32),
        ))
    key, kx = jax.random.split(key)
    inputs = jax.random.normal(kx, (T, N, F), jnp.float32)

    encoder = jax.jit(functools.partial(residual_tds_conv_encoder,
                                        block_channels=block_channels,
                                        kernel_width=kernel_width))
    out = jax.block_until_ready(encoder(inputs, params))

    ref = _encoder_reference(inputs, params,
                             block_channels=block_channels,
                             kernel_width=kernel_width)
    t_expected = T - len(block_channels) * (kernel_width - 1)
    assert out.shape == (t_expected, N, F), out.shape
    max_err = float(jnp.max(jnp.abs(out - ref)))
    assert max_err < 1e-3, f"max abs error {max_err}"
    print("KERNEL_OK")
</pallas_src>

<mosaic_0001>
module attributes {stable_mosaic.version = 11 : i64} {
  func.func @_tds_conv_block_kernel(%arg0: i32, %arg1: memref<56x128xf32, #tpu.memory_space<vmem>>, %arg2: memref<56x128xf32, #tpu.memory_space<vmem>>, %arg3: memref<512x128xf32, #tpu.memory_space<vmem>>, %arg4: memref<1x128xf32, #tpu.memory_space<vmem>>, %arg5: memref<1x128xf32, #tpu.memory_space<vmem>>, %arg6: memref<1x128xf32, #tpu.memory_space<vmem>>, %arg7: memref<56x128xf32, #tpu.memory_space<vmem>>) attributes {dimension_semantics = [#tpu.dimension_semantics<parallel>], iteration_bounds = array<i64: 2>, scalar_prefetch = 0 : i64, scratch_operands = 0 : i64, tpu.core_type = #tpu.core_type<tc>, window_params = [{transform_indices = @transform_0, window_bounds = array<i64: 56, 128>}, {transform_indices = @transform_1, window_bounds = array<i64: 56, 128>}, {pipeline_mode = #tpu.pipeline_mode<synchronous>, transform_indices = @transform_2, window_bounds = array<i64: 512, 128>}, {pipeline_mode = #tpu.pipeline_mode<synchronous>, transform_indices = @transform_3, window_bounds = array<i64: 1, 128>}, {pipeline_mode = #tpu.pipeline_mode<synchronous>, transform_indices = @transform_4, window_bounds = array<i64: 1, 128>}, {pipeline_mode = #tpu.pipeline_mode<synchronous>, transform_indices = @transform_5, window_bounds = array<i64: 1, 128>}, {transform_indices = @transform_6, window_bounds = array<i64: 56, 128>}]} {
    %c0 = arith.constant 0 : index
    %c0_0 = arith.constant 0 : index
    %0 = vector.load %arg1[%c0, %c0_0] : memref<56x128xf32, #tpu.memory_space<vmem>>, vector<56x128xf32>
    %c0_1 = arith.constant 0 : index
    %c0_2 = arith.constant 0 : index
    %1 = vector.load %arg2[%c0_1, %c0_2] : memref<56x128xf32, #tpu.memory_space<vmem>>, vector<24x128xf32>
    %2 = tpu.concatenate %0, %1 in 0 : vector<56x128xf32>, vector<24x128xf32> -> vector<80x128xf32>
    %3 = vector.extract_strided_slice %2 {offsets = [0, 0], sizes = [56, 128], strides = [1, 1]} : vector<80x128xf32> to vector<56x128xf32>
    %c0_3 = arith.constant 0 : index
    %c0_4 = arith.constant 0 : index
    %4 = vector.load %arg3[%c0_3, %c0_4] : memref<512x128xf32, #tpu.memory_space<vmem>>, vector<128x128xf32>
    %cst = arith.constant dense<0.000000e+00> : vector<56x128xf32>
    %5 = tpu.matmul %3, %4, %cst {dimension_numbers = #tpu.dot_dimension_numbers<[1], [0], [0], [1], [0, 0, 1, 1], [], []>} : vector<56x128xf32>, vector<128x128xf32>, vector<56x128xf32> -> vector<56x128xf32>
    %6 = vector.extract_strided_slice %2 {offsets = [8, 0], sizes = [56, 128], strides = [1, 1]} : vector<80x128xf32> to vector<56x128xf32>
    %c128 = arith.constant 128 : index
    %c0_5 = arith.constant 0 : index
    %7 = vector.load %arg3[%c128, %c0_5] : memref<512x128xf32, #tpu.memory_space<vmem>>, vector<128x128xf32>
    %cst_6 = arith.constant dense<0.000000e+00> : vector<56x128xf32>
    %8 = tpu.matmul %6, %7, %cst_6 {dimension_numbers = #tpu.dot_dimension_numbers<[1], [0], [0], [1], [0, 0, 1, 1], [], []>} : vector<56x128xf32>, vector<128x128xf32>, vector<56x128xf32> -> vector<56x128xf32>
    %9 = arith.addf %5, %8 : vector<56x128xf32>
    %10 = arith.maximumf %3, %6 : vector<56x128xf32>
    %11 = vector.extract_strided_slice %2 {offsets = [16, 0], sizes = [56, 128], strides = [1, 1]} : vector<80x128xf32> to vector<56x128xf32>
    %c256 = arith.constant 256 : index
    %c0_7 = arith.constant 0 : index
    %12 = vector.load %arg3[%c256, %c0_7] : memref<512x128xf32, #tpu.memory_space<vmem>>, vector<128x128xf32>
    %cst_8 = arith.constant dense<0.000000e+00> : vector<56x128xf32>
    %13 = tpu.matmul %11, %12, %cst_8 {dimension_numbers = #tpu.dot_dimension_numbers<[1], [0], [0], [1], [0, 0, 1, 1], [], []>} : vector<56x128xf32>, vector<128x128xf32>, vector<56x128xf32> -> vector<56x128xf32>
    %14 = arith.addf %9, %13 : vector<56x128xf32>
    %15 = arith.maximumf %10, %11 : vector<56x128xf32>
    %16 = vector.extract_strided_slice %2 {offsets = [24, 0], sizes = [56, 128], strides = [1, 1]} : vector<80x128xf32> to vector<56x128xf32>
    %c384 = arith.constant 384 : index
    %c0_9 = arith.constant 0 : index
    %17 = vector.load %arg3[%c384, %c0_9] : memref<512x128xf32, #tpu.memory_space<vmem>>, vector<128x128xf32>
    %cst_10 = arith.constant dense<0.000000e+00> : vector<56x128xf32>
    %18 = tpu.matmul %16, %17, %cst_10 {dimension_numbers = #tpu.dot_dimension_numbers<[1], [0], [0], [1], [0, 0, 1, 1], [], []>} : vector<56x128xf32>, vector<128x128xf32>, vector<56x128xf32> -> vector<56x128xf32>
    %19 = arith.addf %14, %18 : vector<56x128xf32>
    %20 = arith.maximumf %15, %16 : vector<56x128xf32>
    %c0_11 = arith.constant 0 : index
    %c0_12 = arith.constant 0 : index
    %21 = vector.load %arg4[%c0_11, %c0_12] : memref<1x128xf32, #tpu.memory_space<vmem>>, vector<1x128xf32>
    %22 = vector.broadcast %21 : vector<1x128xf32> to vector<56x128xf32>
    %23 = arith.addf %19, %22 : vector<56x128xf32>
    %cst_13 = arith.constant 0.000000e+00 : f32
    %24 = vector.broadcast %cst_13 : f32 to vector<56x128xf32>
    %25 = arith.maximumf %23, %24 : vector<56x128xf32>
    %26 = arith.addf %25, %20 : vector<56x128xf32>
    %27 = arith.addf %26, %16 : vector<56x128xf32>
    %cst_14 = arith.constant dense<0.000000e+00> : vector<56xf32>
    %28 = vector.multi_reduction <add>, %27, %cst_14 [1] : vector<56x128xf32> to vector<56xf32>
    %29 = vector.shape_cast %28 : vector<56xf32> to vector<56x1xf32>
    %cst_15 = arith.constant 1.280000e+02 : f32
    %30 = vector.broadcast %cst_15 : f32 to vector<56x1xf32>
    %31 = arith.divf %29, %30 : vector<56x1xf32>
    %32 = vector.broadcast %31 : vector<56x1xf32> to vector<56x128xf32>
    %33 = arith.subf %27, %32 : vector<56x128xf32>
    %34 = arith.mulf %33, %33 : vector<56x128xf32>
    %cst_16 = arith.constant dense<0.000000e+00> : vector<56xf32>
    %35 = vector.multi_reduction <add>, %34, %cst_16 [1] : vector<56x128xf32> to vector<56xf32>
    %36 = vector.shape_cast %35 : vector<56xf32> to vector<56x1xf32>
    %cst_17 = arith.constant 1.280000e+02 : f32
    %37 = vector.broadcast %cst_17 : f32 to vector<56x1xf32>
    %38 = arith.divf %36, %37 : vector<56x1xf32>
    %cst_18 = arith.constant 9.99999974E-6 : f32
    %39 = vector.broadcast %cst_18 : f32 to vector<56x1xf32>
    %40 = arith.addf %38, %39 : vector<56x1xf32>
    %41 = math.rsqrt %40 : vector<56x1xf32>
    %42 = vector.broadcast %41 : vector<56x1xf32> to vector<56x128xf32>
    %43 = arith.mulf %33, %42 : vector<56x128xf32>
    %c0_19 = arith.constant 0 : index
    %c0_20 = arith.constant 0 : index
    %44 = vector.load %arg5[%c0_19, %c0_20] : memref<1x128xf32, #tpu.memory_space<vmem>>, vector<1x128xf32>
    %45 = vector.broadcast %44 : vector<1x128xf32> to vector<56x128xf32>
    %46 = arith.mulf %43, %45 : vector<56x128xf32>
    %c0_21 = arith.constant 0 : index
    %c0_22 = arith.constant 0 : index
    %47 = vector.load %arg6[%c0_21, %c0_22] : memref<1x128xf32, #tpu.memory_space<vmem>>, vector<1x128xf32>
    %48 = vector.broadcast %47 : vector<1x128xf32> to vector<56x128xf32>
    %49 = arith.addf %46, %48 : vector<56x128xf32>
    %c0_23 = arith.constant 0 : index
    %c0_24 = arith.constant 0 : index
    %50 = vector.load %arg7[%c0_23, %c0_24] : memref<56x128xf32, #tpu.memory_space<vmem>>, vector<56x128xf32>
    tpu.vector_store %arg7[%c0_23, %c0_24], %49 {strides = array<i32>} : memref<56x128xf32, #tpu.memory_space<vmem>>, vector<56x128xf32>,
    return
  }
  func.func @transform_0(%arg0: i32) -> (i32, i32) {
    %c0_i32 = arith.constant 0 : i32
    %c0_i32_0 = arith.constant 0 : i32
    return %arg0, %c0_i32 : i32, i32
  }
  func.func @transform_1(%arg0: i32) -> (i32, i32) {
    %c1_i32 = arith.constant 1 : i32
    %0 = arith.addi %arg0, %c1_i32 : i32
    %c0_i32 = arith.constant 0 : i32
    %c0_i32_0 = arith.constant 0 : i32
    return %0, %c0_i32 : i32, i32
  }
  func.func @transform_2(%arg0: i32) -> (i32, i32) {
    %c0_i32 = arith.constant 0 : i32
    %c0_i32_0 = arith.constant 0 : i32
    %c0_i32_1 = arith.constant 0 : i32
    return %c0_i32, %c0_i32_0 : i32, i32
  }
  func.func @transform_3(%arg0: i32) -> (i32, i32) {
    %c0_i32 = arith.constant 0 : i32
    %c0_i32_0 = arith.constant 0 : i32
    %c0_i32_1 = arith.constant 0 : i32
    return %c0_i32, %c0_i32_0 : i32, i32
  }
  func.func @transform_4(%arg0: i32) -> (i32, i32) {
    %c0_i32 = arith.constant 0 : i32
    %c0_i32_0 = arith.constant 0 : i32
    %c0_i32_1 = arith.constant 0 : i32
    return %c0_i32, %c0_i32_0 : i32, i32
  }
  func.func @transform_5(%arg0: i32) -> (i32, i32) {
    %c0_i32 = arith.constant 0 : i32
    %c0_i32_0 = arith.constant 0 : i32
    %c0_i32_1 = arith.constant 0 : i32
    return %c0_i32, %c0_i32_0 : i32, i32
  }
  func.func @transform_6(%arg0: i32) -> (i32, i32) {
    %c0_i32 = arith.constant 0 : i32
    %c0_i32_0 = arith.constant 0 : i32
    return %arg0, %c0_i32 : i32, i32
  }
}

module attributes {stable_mosaic.version = 11 : i64} {
  func.func @_tds_fc_block_kernel(%arg0: i32, %arg1: memref<16x128xf32, #tpu.memory_space<vmem>>, %arg2: memref<128x128xf32, #tpu.memory_space<vmem>>, %arg3: memref<1x128xf32, #tpu.memory_space<vmem>>, %arg4: memref<128x128xf32, #tpu.memory_space<vmem>>, %arg5: memref<1x128xf32, #tpu.memory_space<vmem>>, %arg6: memref<1x128xf32, #tpu.memory_space<vmem>>, %arg7: memref<1x128xf32, #tpu.memory_space<vmem>>, %arg8: memref<16x128xf32, #tpu.memory_space<vmem>>) attributes {dimension_semantics = [#tpu.dimension_semantics<parallel>], iteration_bounds = array<i64: 2>, scalar_prefetch = 0 : i64, scratch_operands = 0 : i64, tpu.core_type = #tpu.core_type<tc>, window_params = [{transform_indices = @transform_0, window_bounds = array<i64: 16, 128>}, {pipeline_mode = #tpu.pipeline_mode<synchronous>, transform_indices = @transform_1, window_bounds = array<i64: 128, 128>}, {pipeline_mode = #tpu.pipeline_mode<synchronous>, transform_indices = @transform_2, window_bounds = array<i64: 1, 128>}, {pipeline_mode = #tpu.pipeline_mode<synchronous>, transform_indices = @transform_3, window_bounds = array<i64: 128, 128>}, {pipeline_mode = #tpu.pipeline_mode<synchronous>, transform_indices = @transform_4, window_bounds = array<i64: 1, 128>}, {pipeline_mode = #tpu.pipeline_mode<synchronous>, transform_indices = @transform_5, window_bounds = array<i64: 1, 128>}, {pipeline_mode = #tpu.pipeline_mode<synchronous>, transform_indices = @transform_6, window_bounds = array<i64: 1, 128>}, {transform_indices = @transform_7, window_bounds = array<i64: 16, 128>}]} {
    %c0 = arith.constant 0 : index
    %c0_0 = arith.constant 0 : index
    %0 = vector.load %arg1[%c0, %c0_0] : memref<16x128xf32, #tpu.memory_space<vmem>>, vector<16x128xf32>
    %c0_1 = arith.constant 0 : index
    %c0_2 = arith.constant 0 : index
    %1 = vector.load %arg2[%c0_1, %c0_2] : memref<128x128xf32, #tpu.memory_space<vmem>>, vector<128x128xf32>
    %cst = arith.constant dense<0.000000e+00> : vector<16x128xf32>
    %2 = tpu.matmul %0, %1, %cst {dimension_numbers = #tpu.dot_dimension_numbers<[1], [0], [0], [1], [0, 0, 1, 1], [], []>} : vector<16x128xf32>, vector<128x128xf32>, vector<16x128xf32> -> vector<16x128xf32>
    %c0_3 = arith.constant 0 : index
    %c0_4 = arith.constant 0 : index
    %3 = vector.load %arg3[%c0_3, %c0_4] : memref<1x128xf32, #tpu.memory_space<vmem>>, vector<1x128xf32>
    %4 = vector.broadcast %3 : vector<1x128xf32> to vector<16x128xf32>
    %5 = arith.addf %2, %4 : vector<16x128xf32>
    %cst_5 = arith.constant 0.000000e+00 : f32
    %6 = vector.broadcast %cst_5 : f32 to vector<16x128xf32>
    %7 = arith.maximumf %5, %6 : vector<16x128xf32>
    %c0_6 = arith.constant 0 : index
    %c0_7 = arith.constant 0 : index
    %8 = vector.load %arg4[%c0_6, %c0_7] : memref<128x128xf32, #tpu.memory_space<vmem>>, vector<128x128xf32>
    %cst_8 = arith.constant dense<0.000000e+00> : vector<16x128xf32>
    %9 = tpu.matmul %7, %8, %cst_8 {dimension_numbers = #tpu.dot_dimension_numbers<[1], [0], [0], [1], [0, 0, 1, 1], [], []>} : vector<16x128xf32>, vector<128x128xf32>, vector<16x128xf32> -> vector<16x128xf32>
    %c0_9 = arith.constant 0 : index
    %c0_10 = arith.constant 0 : index
    %10 = vector.load %arg5[%c0_9, %c0_10] : memref<1x128xf32, #tpu.memory_space<vmem>>, vector<1x128xf32>
    %11 = vector.broadcast %10 : vector<1x128xf32> to vector<16x128xf32>
    %12 = arith.addf %9, %11 : vector<16x128xf32>
    %13 = arith.addf %12, %0 : vector<16x128xf32>
    %cst_11 = arith.constant dense<0.000000e+00> : vector<16xf32>
    %14 = vector.multi_reduction <add>, %13, %cst_11 [1] : vector<16x128xf32> to vector<16xf32>
    %15 = vector.shape_cast %14 : vector<16xf32> to vector<16x1xf32>
    %cst_12 = arith.constant 1.280000e+02 : f32
    %16 = vector.broadcast %cst_12 : f32 to vector<16x1xf32>
    %17 = arith.divf %15, %16 : vector<16x1xf32>
    %18 = vector.broadcast %17 : vector<16x1xf32> to vector<16x128xf32>
    %19 = arith.subf %13, %18 : vector<16x128xf32>
    %20 = arith.mulf %19, %19 : vector<16x128xf32>
    %cst_13 = arith.constant dense<0.000000e+00> : vector<16xf32>
    %21 = vector.multi_reduction <add>, %20, %cst_13 [1] : vector<16x128xf32> to vector<16xf32>
    %22 = vector.shape_cast %21 : vector<16xf32> to vector<16x1xf32>
    %cst_14 = arith.constant 1.280000e+02 : f32
    %23 = vector.broadcast %cst_14 : f32 to vector<16x1xf32>
    %24 = arith.divf %22, %23 : vector<16x1xf32>
    %cst_15 = arith.constant 9.99999974E-6 : f32
    %25 = vector.broadcast %cst_15 : f32 to vector<16x1xf32>
    %26 = arith.addf %24, %25 : vector<16x1xf32>
    %27 = math.rsqrt %26 : vector<16x1xf32>
    %28 = vector.broadcast %27 : vector<16x1xf32> to vector<16x128xf32>
    %29 = arith.mulf %19, %28 : vector<16x128xf32>
    %c0_16 = arith.constant 0 : index
    %c0_17 = arith.constant 0 : index
    %30 = vector.load %arg6[%c0_16, %c0_17] : memref<1x128xf32, #tpu.memory_space<vmem>>, vector<1x128xf32>
    %31 = vector.broadcast %30 : vector<1x128xf32> to vector<16x128xf32>
    %32 = arith.mulf %29, %31 : vector<16x128xf32>
    %c0_18 = arith.constant 0 : index
    %c0_19 = arith.constant 0 : index
    %33 = vector.load %arg7[%c0_18, %c0_19] : memref<1x128xf32, #tpu.memory_space<vmem>>, vector<1x128xf32>
    %34 = vector.broadcast %33 : vector<1x128xf32> to vector<16x128xf32>
    %35 = arith.addf %32, %34 : vector<16x128xf32>
    %c0_20 = arith.constant 0 : index
    %c0_21 = arith.constant 0 : index
    %36 = vector.load %arg8[%c0_20, %c0_21] : memref<16x128xf32, #tpu.memory_space<vmem>>, vector<16x128xf32>
    tpu.vector_store %arg8[%c0_20, %c0_21], %35 {strides = array<i32>} : memref<16x128xf32, #tpu.memory_space<vmem>>, vector<16x128xf32>,
    return
  }
  func.func @transform_0(%arg0: i32) -> (i32, i32) {
    %c0_i32 = arith.constant 0 : i32
    %c0_i32_0 = arith.constant 0 : i32
    return %arg0, %c0_i32 : i32, i32
  }
  func.func @transform_1(%arg0: i32) -> (i32, i32) {
    %c0_i32 = arith.constant 0 : i32
    %c0_i32_0 = arith.constant 0 : i32
    %c0_i32_1 = arith.constant 0 : i32
    return %c0_i32, %c0_i32_0 : i32, i32
  }
  func.func @transform_2(%arg0: i32) -> (i32, i32) {
    %c0_i32 = arith.constant 0 : i32
    %c0_i32_0 = arith.constant 0 : i32
    %c0_i32_1 = arith.constant 0 : i32
    return %c0_i32, %c0_i32_0 : i32, i32
  }
  func.func @transform_3(%arg0: i32) -> (i32, i32) {
    %c0_i32 = arith.constant 0 : i32
    %c0_i32_0 = arith.constant 0 : i32
    %c0_i32_1 = arith.constant 0 : i32
    return %c0_i32, %c0_i32_0 : i32, i32
  }
  func.func @transform_4(%arg0: i32) -> (i32, i32) {
    %c0_i32 = arith.constant 0 : i32
    %c0_i32_0 = arith.constant 0 : i32
    %c0_i32_1 = arith.constant 0 : i32
    return %c0_i32, %c0_i32_0 : i32, i32
  }
  func.func @transform_5(%arg0: i32) -> (i32, i32) {
    %c0_i32 = arith.constant 0 : i32
    %c0_i32_0 = arith.constant 0 : i32
    %c0_i32_1 = arith.constant 0 : i32
    return %c0_i32, %c0_i32_0 : i32, i32
  }
  func.func @transform_6(%arg0: i32) -> (i32, i32) {
    %c0_i32 = arith.constant 0 : i32
    %c0_i32_0 = arith.constant 0 : i32
    %c0_i32_1 = arith.constant 0 : i32
    return %c0_i32, %c0_i32_0 : i32, i32
  }
  func.func @transform_7(%arg0: i32) -> (i32, i32) {
    %c0_i32 = arith.constant 0 : i32
    %c0_i32_0 = arith.constant 0 : i32
    return %arg0, %c0_i32 : i32, i32
  }
}

module attributes {stable_mosaic.version = 11 : i64} {
  func.func @_tds_conv_block_kernel(%arg0: i32, %arg1: memref<40x128xf32, #tpu.memory_space<vmem>>, %arg2: memref<40x128xf32, #tpu.memory_space<vmem>>, %arg3: memref<512x128xf32, #tpu.memory_space<vmem>>, %arg4: memref<1x128xf32, #tpu.memory_space<vmem>>, %arg5: memref<1x128xf32, #tpu.memory_space<vmem>>, %arg6: memref<1x128xf32, #tpu.memory_space<vmem>>, %arg7: memref<40x128xf32, #tpu.memory_space<vmem>>) attributes {dimension_semantics = [#tpu.dimension_semantics<parallel>], iteration_bounds = array<i64: 2>, scalar_prefetch = 0 : i64, scratch_operands = 0 : i64, tpu.core_type = #tpu.core_type<tc>, window_params = [{transform_indices = @transform_0, window_bounds = array<i64: 40, 128>}, {transform_indices = @transform_1, window_bounds = array<i64: 40, 128>}, {pipeline_mode = #tpu.pipeline_mode<synchronous>, transform_indices = @transform_2, window_bounds = array<i64: 512, 128>}, {pipeline_mode = #tpu.pipeline_mode<synchronous>, transform_indices = @transform_3, window_bounds = array<i64: 1, 128>}, {pipeline_mode = #tpu.pipeline_mode<synchronous>, transform_indices = @transform_4, window_bounds = array<i64: 1, 128>}, {pipeline_mode = #tpu.pipeline_mode<synchronous>, transform_indices = @transform_5, window_bounds = array<i64: 1, 128>}, {transform_indices = @transform_6, window_bounds = array<i64: 40, 128>}]} {
    %c0 = arith.constant 0 : index
    %c0_0 = arith.constant 0 : index
    %0 = vector.load %arg1[%c0, %c0_0] : memref<40x128xf32, #tpu.memory_space<vmem>>, vector<40x128xf32>
    %c0_1 = arith.constant 0 : index
    %c0_2 = arith.constant 0 : index
    %1 = vector.load %arg2[%c0_1, %c0_2] : memref<40x128xf32, #tpu.memory_space<vmem>>, vector<24x128xf32>
    %2 = tpu.concatenate %0, %1 in 0 : vector<40x128xf32>, vector<24x128xf32> -> vector<64x128xf32>
    %3 = vector.extract_strided_slice %2 {offsets = [0, 0], sizes = [40, 128], strides = [1, 1]} : vector<64x128xf32> to vector<40x128xf32>
    %c0_3 = arith.constant 0 : index
    %c0_4 = arith.constant 0 : index
    %4 = vector.load %arg3[%c0_3, %c0_4] : memref<512x128xf32, #tpu.memory_space<vmem>>, vector<128x128xf32>
    %cst = arith.constant dense<0.000000e+00> : vector<40x128xf32>
    %5 = tpu.matmul %3, %4, %cst {dimension_numbers = #tpu.dot_dimension_numbers<[1], [0], [0], [1], [0, 0, 1, 1], [], []>} : vector<40x128xf32>, vector<128x128xf32>, vector<40x128xf32> -> vector<40x128xf32>
    %6 = vector.extract_strided_slice %2 {offsets = [8, 0], sizes = [40, 128], strides = [1, 1]} : vector<64x128xf32> to vector<40x128xf32>
    %c128 = arith.constant 128 : index
    %c0_5 = arith.constant 0 : index
    %7 = vector.load %arg3[%c128, %c0_5] : memref<512x128xf32, #tpu.memory_space<vmem>>, vector<128x128xf32>
    %cst_6 = arith.constant dense<0.000000e+00> : vector<40x128xf32>
    %8 = tpu.matmul %6, %7, %cst_6 {dimension_numbers = #tpu.dot_dimension_numbers<[1], [0], [0], [1], [0, 0, 1, 1], [], []>} : vector<40x128xf32>, vector<128x128xf32>, vector<40x128xf32> -> vector<40x128xf32>
    %9 = arith.addf %5, %8 : vector<40x128xf32>
    %10 = arith.maximumf %3, %6 : vector<40x128xf32>
    %11 = vector.extract_strided_slice %2 {offsets = [16, 0], sizes = [40, 128], strides = [1, 1]} : vector<64x128xf32> to vector<40x128xf32>
    %c256 = arith.constant 256 : index
    %c0_7 = arith.constant 0 : index
    %12 = vector.load %arg3[%c256, %c0_7] : memref<512x128xf32, #tpu.memory_space<vmem>>, vector<128x128xf32>
    %cst_8 = arith.constant dense<0.000000e+00> : vector<40x128xf32>
    %13 = tpu.matmul %11, %12, %cst_8 {dimension_numbers = #tpu.dot_dimension_numbers<[1], [0], [0], [1], [0, 0, 1, 1], [], []>} : vector<40x128xf32>, vector<128x128xf32>, vector<40x128xf32> -> vector<40x128xf32>
    %14 = arith.addf %9, %13 : vector<40x128xf32>
    %15 = arith.maximumf %10, %11 : vector<40x128xf32>
    %16 = vector.extract_strided_slice %2 {offsets = [24, 0], sizes = [40, 128], strides = [1, 1]} : vector<64x128xf32> to vector<40x128xf32>
    %c384 = arith.constant 384 : index
    %c0_9 = arith.constant 0 : index
    %17 = vector.load %arg3[%c384, %c0_9] : memref<512x128xf32, #tpu.memory_space<vmem>>, vector<128x128xf32>
    %cst_10 = arith.constant dense<0.000000e+00> : vector<40x128xf32>
    %18 = tpu.matmul %16, %17, %cst_10 {dimension_numbers = #tpu.dot_dimension_numbers<[1], [0], [0], [1], [0, 0, 1, 1], [], []>} : vector<40x128xf32>, vector<128x128xf32>, vector<40x128xf32> -> vector<40x128xf32>
    %19 = arith.addf %14, %18 : vector<40x128xf32>
    %20 = arith.maximumf %15, %16 : vector<40x128xf32>
    %c0_11 = arith.constant 0 : index
    %c0_12 = arith.constant 0 : index
    %21 = vector.load %arg4[%c0_11, %c0_12] : memref<1x128xf32, #tpu.memory_space<vmem>>, vector<1x128xf32>
    %22 = vector.broadcast %21 : vector<1x128xf32> to vector<40x128xf32>
    %23 = arith.addf %19, %22 : vector<40x128xf32>
    %cst_13 = arith.constant 0.000000e+00 : f32
    %24 = vector.broadcast %cst_13 : f32 to vector<40x128xf32>
    %25 = arith.maximumf %23, %24 : vector<40x128xf32>
    %26 = arith.addf %25, %20 : vector<40x128xf32>
    %27 = arith.addf %26, %16 : vector<40x128xf32>
    %cst_14 = arith.constant dense<0.000000e+00> : vector<40xf32>
    %28 = vector.multi_reduction <add>, %27, %cst_14 [1] : vector<40x128xf32> to vector<40xf32>
    %29 = vector.shape_cast %28 : vector<40xf32> to vector<40x1xf32>
    %cst_15 = arith.constant 1.280000e+02 : f32
    %30 = vector.broadcast %cst_15 : f32 to vector<40x1xf32>
    %31 = arith.divf %29, %30 : vector<40x1xf32>
    %32 = vector.broadcast %31 : vector<40x1xf32> to vector<40x128xf32>
    %33 = arith.subf %27, %32 : vector<40x128xf32>
    %34 = arith.mulf %33, %33 : vector<40x128xf32>
    %cst_16 = arith.constant dense<0.000000e+00> : vector<40xf32>
    %35 = vector.multi_reduction <add>, %34, %cst_16 [1] : vector<40x128xf32> to vector<40xf32>
    %36 = vector.shape_cast %35 : vector<40xf32> to vector<40x1xf32>
    %cst_17 = arith.constant 1.280000e+02 : f32
    %37 = vector.broadcast %cst_17 : f32 to vector<40x1xf32>
    %38 = arith.divf %36, %37 : vector<40x1xf32>
    %cst_18 = arith.constant 9.99999974E-6 : f32
    %39 = vector.broadcast %cst_18 : f32 to vector<40x1xf32>
    %40 = arith.addf %38, %39 : vector<40x1xf32>
    %41 = math.rsqrt %40 : vector<40x1xf32>
    %42 = vector.broadcast %41 : vector<40x1xf32> to vector<40x128xf32>
    %43 = arith.mulf %33, %42 : vector<40x128xf32>
    %c0_19 = arith.constant 0 : index
    %c0_20 = arith.constant 0 : index
    %44 = vector.load %arg5[%c0_19, %c0_20] : memref<1x128xf32, #tpu.memory_space<vmem>>, vector<1x128xf32>
    %45 = vector.broadcast %44 : vector<1x128xf32> to vector<40x128xf32>
    %46 = arith.mulf %43, %45 : vector<40x128xf32>
    %c0_21 = arith.constant 0 : index
    %c0_22 = arith.constant 0 : index
    %47 = vector.load %arg6[%c0_21, %c0_22] : memref<1x128xf32, #tpu.memory_space<vmem>>, vector<1x128xf32>
    %48 = vector.broadcast %47 : vector<1x128xf32> to vector<40x128xf32>
    %49 = arith.addf %46, %48 : vector<40x128xf32>
    %c0_23 = arith.constant 0 : index
    %c0_24 = arith.constant 0 : index
    %50 = vector.load %arg7[%c0_23, %c0_24] : memref<40x128xf32, #tpu.memory_space<vmem>>, vector<40x128xf32>
    tpu.vector_store %arg7[%c0_23, %c0_24], %49 {strides = array<i32>} : memref<40x128xf32, #tpu.memory_space<vmem>>, vector<40x128xf32>,
    return
  }
  func.func @transform_0(%arg0: i32) -> (i32, i32) {
    %c0_i32 = arith.constant 0 : i32
    %c0_i32_0 = arith.constant 0 : i32
    return %arg0, %c0_i32 : i32, i32
  }
  func.func @transform_1(%arg0: i32) -> (i32, i32) {
    %c1_i32 = arith.constant 1 : i32
    %0 = arith.addi %arg0, %c1_i32 : i32
    %c0_i32 = arith.constant 0 : i32
    %c0_i32_0 = arith.constant 0 : i32
    return %0, %c0_i32 : i32, i32
  }
  func.func @transform_2(%arg0: i32) -> (i32, i32) {
    %c0_i32 = arith.constant 0 : i32
    %c0_i32_0 = arith.constant 0 : i32
    %c0_i32_1 = arith.constant 0 : i32
    return %c0_i32, %c0_i32_0 : i32, i32
  }
  func.func @transform_3(%arg0: i32) -> (i32, i32) {
    %c0_i32 = arith.constant 0 : i32
    %c0_i32_0 = arith.constant 0 : i32
    %c0_i32_1 = arith.constant 0 : i32
    return %c0_i32, %c0_i32_0 : i32, i32
  }
  func.func @transform_4(%arg0: i32) -> (i32, i32) {
    %c0_i32 = arith.constant 0 : i32
    %c0_i32_0 = arith.constant 0 : i32
    %c0_i32_1 = arith.constant 0 : i32
    return %c0_i32, %c0_i32_0 : i32, i32
  }
  func.func @transform_5(%arg0: i32) -> (i32, i32) {
    %c0_i32 = arith.constant 0 : i32
    %c0_i32_0 = arith.constant 0 : i32
    %c0_i32_1 = arith.constant 0 : i32
    return %c0_i32, %c0_i32_0 : i32, i32
  }
  func.func @transform_6(%arg0: i32) -> (i32, i32) {
    %c0_i32 = arith.constant 0 : i32
    %c0_i32_0 = arith.constant 0 : i32
    return %arg0, %c0_i32 : i32, i32
  }
}

</mosaic_0001>

<llo_original>
// kernel: residual_tds_conv_encoder.5
$region0: #{residual_tds_conv_encoder.5}
  #allocation0 [shape = 'u32[]', space=smem, size = 0x4, offset = 0x4, fixed_abs, tag = 'smem constant byte address 0x4 - core index']
  #allocation1 [shape = 'u32[144,128]{1,0:T(1,128)}', space=vmem, size = 0x12000, scoped, tag = 'internal scratch']
  %s0 = inlined_call_operand.vmem [shape: f32[32,128], index: 0, kind: input, shape index: {}]
  %s1 = inlined_call_operand.vmem [shape: f32[128,128], index: 1, kind: input, shape index: {}]
  %s2 = inlined_call_operand.vmem [shape: f32[1,128], index: 2, kind: input, shape index: {}]
  %s3 = inlined_call_operand.vmem [shape: f32[128,128], index: 3, kind: input, shape index: {}]
  %s4 = inlined_call_operand.vmem [shape: f32[1,128], index: 4, kind: input, shape index: {}]
  %s5 = inlined_call_operand.vmem [shape: f32[1,128], index: 5, kind: input, shape index: {}]
  %s6 = inlined_call_operand.vmem [shape: f32[1,128], index: 6, kind: input, shape index: {}]
  %s7 = inlined_call_operand.vmem [shape: f32[32,128], index: 7, kind: output, shape index: {}]
  %s8 = sld [smem:[#allocation0]]
  $region61: #{residual_tds_conv_encoder.5} parent=0
    _
  %s10 = ssub.s32 1, %s8
  %s11 = scalar_select 0, %s10, %s8
  loop: start=0, step=1, limit=4
  $region2: #{residual_tds_conv_encoder.5} parent=0 // loop_pre_header
    _
  $region3: #{residual_tds_conv_encoder.5} parent=0 // loop_header
    %s13 = sphi 0, %s17
    %p14 = scmp.ge.s32.totalorder %s13, 4
    %s23 = sphi 0, %s25
    %s26 = sphi 0, %s23
    %s27 = sphi 0, %s26
    %s43 = sphi 0, %s27
    %s47 = sphi 0, %s47
    %s49 = sphi 0, %s47
    %s50 = sphi 0, %s49
    %s64 = sphi 0, %s50
    %s68 = sphi 0, %s68
    %s70 = sphi 0, %s68
    %s71 = sphi 0, %s70
    %s85 = sphi 0, %s71
    %s89 = sphi 0, %s89
    %s91 = sphi 0, %s89
    %s92 = sphi 0, %s91
    %s106 = sphi 0, %s92
    %s110 = sphi 0, %s110
    %s112 = sphi 0, %s110
    %s113 = sphi 0, %s112
    %s127 = sphi 0, %s113
    %s131 = sphi 0, %s131
    %s133 = sphi 0, %s131
    %s134 = sphi 0, %s133
    %s148 = sphi 0, %s134
    %s152 = sphi 0, %s152
    %s154 = sphi 0, %s152
    %s155 = sphi 0, %s154
    %s169 = sphi 0, %s155
    %s175 = sphi 0, %s177
    %s178 = sphi 0, %s175
    %s179 = sphi 0, %s178
    %s195 = sphi 0, %s179
  $region4: #{residual_tds_conv_encoder.5} parent=0 // loop_header_branch
    %16 = sbr.rel (%p14) target = $region8
  $region5: #{residual_tds_conv_encoder.5} parent=0 // loop_body
    %s18 = ssub.s32 %s13, 1
    %s19 = ssub.s32 %s13, 2
    %s20 = sadd.s32 %s13, 1
    %s21 = ssub.s32 %s13, %s20
    %p22 = scmp.eq.s32.totalorder %s21, 0
    %s24 = sadd.s32 %s23, 1
    %s25 = scalar_select %p22, %s23, %s24
    %p28 = pneg %p22
    %p29 = scmp.eq.s32.totalorder %s13, 1
    %p30 = por %p28, %p29
    %p31 = scmp.ne.s32.totalorder %s23, %s26
    %p32 = scmp.eq.s32.totalorder %s13, 0
    %p33 = por %p31, %p32
    %p34 = scmp.ne.s32.totalorder %s23, %s26
    %p35 = scmp.eq.s32.totalorder %s18, 1
    %p36 = por %p34, %p35
    %p37 = scmp.ne.s32.totalorder %s26, %s27
    %p38 = scmp.eq.s32.totalorder %s18, 0
    %p39 = por %p37, %p38
    %p40 = scmp.ne.s32.totalorder %s26, %s27
    %p41 = scmp.eq.s32.totalorder %s19, 1
    %p42 = por %p40, %p41
    %p44 = scmp.ne.s32.totalorder %s27, %s43
    %p45 = scmp.eq.s32.totalorder %s19, 0
    %p46 = por %p44, %p45
    %s48 = sadd.s32 %s47, 1
    %p51 = scmp.eq.s32.totalorder %s13, 1
    %p52 = scmp.ne.s32.totalorder %s47, %s49
    %p53 = scmp.eq.s32.totalorder %s13, 0
    %p54 = por %p52, %p53
    %p55 = scmp.ne.s32.totalorder %s47, %s49
    %p56 = scmp.eq.s32.totalorder %s18, 1
    %p57 = por %p55, %p56
    %p58 = scmp.ne.s32.totalorder %s49, %s50
    %p59 = scmp.eq.s32.totalorder %s18, 0
    %p60 = por %p58, %p59
    %p61 = scmp.ne.s32.totalorder %s49, %s50
    %p62 = scmp.eq.s32.totalorder %s19, 1
    %p63 = por %p61, %p62
    %p65 = scmp.ne.s32.totalorder %s50, %s64
    %p66 = scmp.eq.s32.totalorder %s19, 0
    %p67 = por %p65, %p66
    %s69 = sadd.s32 %s68, 1
    %p72 = scmp.eq.s32.totalorder %s13, 1
    %p73 = scmp.ne.s32.totalorder %s68, %s70
    %p74 = scmp.eq.s32.totalorder %s13, 0
    %p75 = por %p73, %p74
    %p76 = scmp.ne.s32.totalorder %s68, %s70
    %p77 = scmp.eq.s32.totalorder %s18, 1
    %p78 = por %p76, %p77
    %p79 = scmp.ne.s32.totalorder %s70, %s71
    %p80 = scmp.eq.s32.totalorder %s18, 0
    %p81 = por %p79, %p80
    %p82 = scmp.ne.s32.totalorder %s70, %s71
    %p83 = scmp.eq.s32.totalorder %s19, 1
    %p84 = por %p82, %p83
    %p86 = scmp.ne.s32.totalorder %s71, %s85
    %p87 = scmp.eq.s32.totalorder %s19, 0
    %p88 = por %p86, %p87
    %s90 = sadd.s32 %s89, 1
    %p93 = scmp.eq.s32.totalorder %s13, 1
    %p94 = scmp.ne.s32.totalorder %s89, %s91
    %p95 = scmp.eq.s32.totalorder %s13, 0
    %p96 = por %p94, %p95
    %p97 = scmp.ne.s32.totalorder %s89, %s91
    %p98 = scmp.eq.s32.totalorder %s18, 1
    %p99 = por %p97, %p98
    %p100 = scmp.ne.s32.totalorder %s91, %s92
    %p101 = scmp.eq.s32.totalorder %s18, 0
    %p102 = por %p100, %p101
    %p103 = scmp.ne.s32.totalorder %s91, %s92
    %p104 = scmp.eq.s32.totalorder %s19, 1
    %p105 = por %p103, %p104
    %p107 = scmp.ne.s32.totalorder %s92, %s106
    %p108 = scmp.eq.s32.totalorder %s19, 0
    %p109 = por %p107, %p108
    %s111 = sadd.s32 %s110, 1
    %p114 = scmp.eq.s32.totalorder %s13, 1
    %p115 = scmp.ne.s32.totalorder %s110, %s112
    %p116 = scmp.eq.s32.totalorder %s13, 0
    %p117 = por %p115, %p116
    %p118 = scmp.ne.s32.totalorder %s110, %s112
    %p119 = scmp.eq.s32.totalorder %s18, 1
    %p120 = por %p118, %p119
    %p121 = scmp.ne.s32.totalorder %s112, %s113
    %p122 = scmp.eq.s32.totalorder %s18, 0
    %p123 = por %p121, %p122
    %p124 = scmp.ne.s32.totalorder %s112, %s113
    %p125 = scmp.eq.s32.totalorder %s19, 1
    %p126 = por %p124, %p125
    %p128 = scmp.ne.s32.totalorder %s113, %s127
    %p129 = scmp.eq.s32.totalorder %s19, 0
    %p130 = por %p128, %p129
    %s132 = sadd.s32 %s131, 1
    %p135 = scmp.eq.s32.totalorder %s13, 1
    %p136 = scmp.ne.s32.totalorder %s131, %s133
    %p137 = scmp.eq.s32.totalorder %s13, 0
    %p138 = por %p136, %p137
    %p139 = scmp.ne.s32.totalorder %s131, %s133
    %p140 = scmp.eq.s32.totalorder %s18, 1
    %p141 = por %p139, %p140
    %p142 = scmp.ne.s32.totalorder %s133, %s134
    %p143 = scmp.eq.s32.totalorder %s18, 0
    %p144 = por %p142, %p143
    %p145 = scmp.ne.s32.totalorder %s133, %s134
    %p146 = scmp.eq.s32.totalorder %s19, 1
    %p147 = por %p145, %p146
    %p149 = scmp.ne.s32.totalorder %s134, %s148
    %p150 = scmp.eq.s32.totalorder %s19, 0
    %p151 = por %p149, %p150
    %s153 = sadd.s32 %s152, 1
    %p156 = scmp.eq.s32.totalorder %s13, 1
    %p157 = scmp.ne.s32.totalorder %s152, %s154
    %p158 = scmp.eq.s32.totalorder %s13, 0
    %p159 = por %p157, %p158
    %p160 = scmp.ne.s32.totalorder %s152, %s154
    %p161 = scmp.eq.s32.totalorder %s18, 1
    %p162 = por %p160, %p161
    %p163 = scmp.ne.s32.totalorder %s154, %s155
    %p164 = scmp.eq.s32.totalorder %s18, 0
    %p165 = por %p163, %p164
    %p166 = scmp.ne.s32.totalorder %s154, %s155
    %p167 = scmp.eq.s32.totalorder %s19, 1
    %p168 = por %p166, %p167
    %p170 = scmp.ne.s32.totalorder %s155, %s169
    %p171 = scmp.eq.s32.totalorder %s19, 0
    %p172 = por %p170, %p171
    %s173 = ssub.s32 %s13, %s20
    %p174 = scmp.eq.s32.totalorder %s173, 0
    %s176 = sadd.s32 %s175, 1
    %s177 = scalar_select %p174, %s175, %s176
    %p180 = pneg %p174
    %p181 = scmp.eq.s32.totalorder %s13, 1
    %p182 = por %p180, %p181
    %p183 = scmp.ne.s32.totalorder %s175, %s178
    %p184 = scmp.eq.s32.totalorder %s13, 0
    %p185 = por %p183, %p184
    %p186 = scmp.ne.s32.totalorder %s175, %s178
    %p187 = scmp.eq.s32.totalorder %s18, 1
    %p188 = por %p186, %p187
    %p189 = scmp.ne.s32.totalorder %s178, %s179
    %p190 = scmp.eq.s32.totalorder %s18, 0
    %p191 = por %p189, %p190
    %p192 = scmp.ne.s32.totalorder %s178, %s179
    %p193 = scmp.eq.s32.totalorder %s19, 1
    %p194 = por %p192, %p193
    %p196 = scmp.ne.s32.totalorder %s179, %s195
    %p197 = scmp.eq.s32.totalorder %s19, 0
    %p198 = por %p196, %p197
    %p199 = scmp.le.s32.totalorder 1, %s13
    %p200 = scmp.lt.s32.totalorder %s13, 3
    %p201 = pnand %p199, %p200
    %p202 = pneg %p201
    // Predicated region
    $region9: #{residual_tds_conv_encoder.5} parent=5 // pred_check
      _
    $region10: #{residual_tds_conv_encoder.5} parent=5 // pred_check_branch
      %204 = sbr.rel (%p201) target = $region12
    $region11: #{residual_tds_conv_encoder.5} parent=5 // pred_region
      %s205 = ssub.s32 %s13, 1
      // Predicated region
      $region13: #{residual_tds_conv_encoder.5} parent=11 // pred_check
        %p206 = pneg %p60
      $region14: #{residual_tds_conv_encoder.5} parent=11 // pred_check_branch
        %208 = sbr.rel (%p206) target = $region16
      $region15: #{residual_tds_conv_encoder.5} parent=11 // pred_region
        _
      $region16: #{residual_tds_conv_encoder.5} parent=11 // pred_fallthru
        _
      // Predicated region
      $region17: #{residual_tds_conv_encoder.5} parent=11 // pred_check
        %p209 = pneg %p81
      $region18: #{residual_tds_conv_encoder.5} parent=11 // pred_check_branch
        %211 = sbr.rel (%p209) target = $region20
      $region19: #{residual_tds_conv_encoder.5} parent=11 // pred_region
        _
      $region20: #{residual_tds_conv_encoder.5} parent=11 // pred_fallthru
        _
      // Predicated region
      $region21: #{residual_tds_conv_encoder.5} parent=11 // pred_check
        %p212 = pneg %p102
      $region22: #{residual_tds_conv_encoder.5} parent=11 // pred_check_branch
        %214 = sbr.rel (%p212) target = $region24
      $region23: #{residual_tds_conv_encoder.5} parent=11 // pred_region
        _
      $region24: #{residual_tds_conv_encoder.5} parent=11 // pred_fallthru
        _
      // Predicated region
      $region25: #{residual_tds_conv_encoder.5} parent=11 // pred_check
        %p215 = pneg %p123
      $region26: #{residual_tds_conv_encoder.5} parent=11 // pred_check_branch
        %217 = sbr.rel (%p215) target = $region28
      $region27: #{residual_tds_conv_encoder.5} parent=11 // pred_region
        _
      $region28: #{residual_tds_conv_encoder.5} parent=11 // pred_fallthru
        _
      // Predicated region
      $region29: #{residual_tds_conv_encoder.5} parent=11 // pred_check
        %p218 = pneg %p144
      $region30: #{residual_tds_conv_encoder.5} parent=11 // pred_check_branch
        %220 = sbr.rel (%p218) target = $region32
      $region31: #{residual_tds_conv_encoder.5} parent=11 // pred_region
        _
      $region32: #{residual_tds_conv_encoder.5} parent=11 // pred_fallthru
        _
      // Predicated region
      $region33: #{residual_tds_conv_encoder.5} parent=11 // pred_check
        %p221 = pneg %p165
      $region34: #{residual_tds_conv_encoder.5} parent=11 // pred_check_branch
        %223 = sbr.rel (%p221) target = $region36
      $region35: #{residual_tds_conv_encoder.5} parent=11 // pred_region
        _
      $region36: #{residual_tds_conv_encoder.5} parent=11 // pred_fallthru
        _
    $region12: #{residual_tds_conv_encoder.5} parent=5 // pred_fallthru
      _
    %p224 = scmp.lt.s32.totalorder %s13, 2
    // Predicated region
    $region37: #{residual_tds_conv_encoder.5} parent=5 // pred_check
      %p225 = pneg %p224
    $region38: #{residual_tds_conv_encoder.5} parent=5 // pred_check_branch
      %227 = sbr.rel (%p225) target = $region40
    $region39: #{residual_tds_conv_encoder.5} parent=5 // pred_region
      // Predicated region
      $region41: #{residual_tds_conv_encoder.5} parent=39 // pred_check
        %p228 = pneg %p33
      $region42: #{residual_tds_conv_encoder.5} parent=39 // pred_check_branch
        %230 = sbr.rel (%p228) target = $region44
      $region43: #{residual_tds_conv_encoder.5} parent=39 // pred_region
        %s231 = smul.u32 2, %s13
        %p232 = scmp.lt.s32.totalorder %s231, 3
        %s233 = scalar_select %p232, %s231, 3
        %s234 = smul.addr %s233, 8
        %s235 = scalar_lea.vmem %s0, %s234
        %s236 = smul.u32 2, %s13
      $region44: #{residual_tds_conv_encoder.5} parent=39 // pred_fallthru
        _
    $region40: #{residual_tds_conv_encoder.5} parent=5 // pred_fallthru
      _
    %p237 = scmp.le.s32.totalorder 1, %s13
    %p238 = scmp.lt.s32.totalorder %s13, 3
    %p239 = pnand %p237, %p238
    %p240 = pneg %p239
    // Predicated region
    $region45: #{residual_tds_conv_encoder.5} parent=5 // pred_check
      _
    $region46: #{residual_tds_conv_encoder.5} parent=5 // pred_check_branch
      %242 = sbr.rel (%p239) target = $region48
    $region47: #{residual_tds_conv_encoder.5} parent=5 // pred_region
      %s243 = ssub.s32 %s13, 1
      %s244 = smul.u32 2, %s18
      %p245 = scmp.lt.s32.totalorder %s244, 3
      %s246 = scalar_select %p245, %s244, 3
      %s247 = smul.addr %s246, 8
      %s248 = scalar_lea.vmem %s0, %s247
      %p249 = pneg %p39
      %p250 = pneg %p36
      %p251 = pneg %p60
      %p252 = pneg %p57
      %p253 = pneg %p81
      %p254 = pneg %p78
      %p255 = pneg %p102
      %p256 = pneg %p99
      %p257 = pneg %p123
      %p258 = pneg %p120
      %p259 = pneg %p144
      %p260 = pneg %p141
      %p261 = pneg %p165
      %p262 = pneg %p162
      %p263 = pneg %p191
      %p264 = pneg %p188
      %s265 = smul.u32 2, %s18
      %p266 = scmp.lt.s32.totalorder %s265, 3
      %s267 = scalar_select %p266, %s265, 3
      %s268 = smul.addr %s267, 8
      %s269 = scalar_lea.vmem %s7, %s268
      %s270 = smul.u32 2, %s18
      %p271 = scmp.lt.s32.totalorder %s270, 3
      %s272 = scalar_select %p271, %s270, 3
      %s273 = smul.addr %s272, 8
      %s274 = scalar_lea.vmem %s0, %s273
      %s275 = smul.u32 2, %s18
      %s276 = smul.u32 2, %s18
      %p277 = scmp.lt.s32.totalorder %s276, 3
      %s278 = scalar_select %p277, %s276, 3
      %s279 = smul.addr %s278, 8
      %s280 = scalar_lea.vmem %s7, %s279
      %s281 = smul.u32 2, %s18
      %v282 = vld [vmem:[%s274] sm:$0xff]
      %v283 = vld [vmem:[%s274 + $0x8] sm:$0xff]
      %v284 = vld [vmem:[%s1] sm:$0xff]
      %v285 = vld [vmem:[%s1 + $0x8] sm:$0xff]
      %v286 = vld [vmem:[%s1 + $0x10] sm:$0xff]
      %v287 = vld [vmem:[%s1 + $0x18] sm:$0xff]
      %v288 = vld [vmem:[%s1 + $0x20] sm:$0xff]
      %v289 = vld [vmem:[%s1 + $0x28] sm:$0xff]
      %v290 = vld [vmem:[%s1 + $0x30] sm:$0xff]
      %v291 = vld [vmem:[%s1 + $0x38] sm:$0xff]
      %v292 = vld [vmem:[%s1 + $0x40] sm:$0xff]
      %v293 = vld [vmem:[%s1 + $0x48] sm:$0xff]
      %v294 = vld [vmem:[%s1 + $0x50] sm:$0xff]
      %v295 = vld [vmem:[%s1 + $0x58] sm:$0xff]
      %v296 = vld [vmem:[%s1 + $0x60] sm:$0xff]
      %v297 = vld [vmem:[%s1 + $0x68] sm:$0xff]
      %v298 = vld [vmem:[%s1 + $0x70] sm:$0xff]
      %v299 = vld [vmem:[%s1 + $0x78] sm:$0xff]
      %v300 = vld [vmem:[%s2] sm:$0x1]
      %v302 = vlaneseq
      %v303 = vshrl.u32 %v302, 7
      %v304 = vsub.s32 0, %v303
      %v305 = vrot.slane %v300, %v304
      %307 = vmatprep.subr.mxu0 0.0
      %308 = vmatpush1.msra.mxu0 %v299
      %309 = vmatprep.subr.mxu0 0.0
      %310 = vmatpush1.msra.mxu0 %v298
      %311 = vmatprep.subr.mxu0 0.0
      %312 = vmatpush1.msra.mxu0 %v297
      %313 = vmatprep.subr.mxu0 0.0
      %314 = vmatpush1.msra.mxu0 %v296
      %315 = vmatprep.subr.mxu0 0.0
      %316 = vmatpush1.msra.mxu0 %v295
      %317 = vmatprep.subr.mxu0 0.0
      %318 = vmatpush1.msra.mxu0 %v294
      %319 = vmatprep.subr.mxu0 0.0
      %320 = vmatpush1.msra.mxu0 %v293
      %321 = vmatprep.subr.mxu0 0.0
      %322 = vmatpush1.msra.mxu0 %v292
      %323 = vmatprep.subr.mxu0 0.0
      %324 = vmatpush1.msra.mxu0 %v291
      %325 = vmatprep.subr.mxu0 0.0
      %326 = vmatpush1.msra.mxu0 %v290
      %327 = vmatprep.subr.mxu0 0.0
      %328 = vmatpush1.msra.mxu0 %v289
      %329 = vmatprep.subr.mxu0 0.0
      %330 = vmatpush1.msra.mxu0 %v288
      %331 = vmatprep.subr.mxu0 0.0
      %332 = vmatpush1.msra.mxu0 %v287
      %333 = vmatprep.subr.mxu0 0.0
      %334 = vmatpush1.msra.mxu0 %v286
      %335 = vmatprep.subr.mxu0 0.0
      %336 = vmatpush1.msra.mxu0 %v285
      %337 = vmatprep.subr.mxu0 0.0
      %338 = vmatpush1.msra.mxu0 %v284
      %339 = vmatprep.subr.mxu0 0.0
      %340 = vmatpush2.msra.mxu0 0.0
      %341 = vmatprep.subr.mxu0 0.0
      %342 = vmatpush2.msra.mxu0 0.0
      %343 = vmatprep.subr.mxu0 0.0
      %344 = vmatpush2.msra.mxu0 0.0
      %345 = vmatprep.subr.mxu0 0.0
      %346 = vmatpush2.msra.mxu0 0.0
      %347 = vmatprep.subr.mxu0 0.0
      %348 = vmatpush2.msra.mxu0 0.0
      %349 = vmatprep.subr.mxu0 0.0
      %350 = vmatpush2.msra.mxu0 0.0
      %351 = vmatprep.subr.mxu0 0.0
      %352 = vmatpush2.msra.mxu0 0.0
      %353 = vmatprep.subr.mxu0 0.0
      %354 = vmatpush2.msra.mxu0 0.0
      %355 = vmatprep.subr.mxu0 0.0
      %356 = vmatpush2.msra.mxu0 0.0
      %357 = vmatprep.subr.mxu0 0.0
      %358 = vmatpush2.msra.mxu0 0.0
      %359 = vmatprep.subr.mxu0 0.0
      %360 = vmatpush2.msra.mxu0 0.0
      %361 = vmatprep.subr.mxu0 0.0
      %362 = vmatpush2.msra.mxu0 0.0
      %363 = vmatprep.subr.mxu0 0.0
      %364 = vmatpush2.msra.mxu0 0.0
      %365 = vmatprep.subr.mxu0 0.0
      %366 = vmatpush2.msra.mxu0 0.0
      %367 = vmatprep.subr.mxu0 0.0
      %368 = vmatpush2.msra.mxu0 0.0
      %369 = vmatprep.subr.mxu0 0.0
      %370 = vmatpush2.msra.mxu0 0.0
      %371 = vmatprep.mubr.f32.mxu0 0.0
      %372 = vmatmul.mubr.f32.gmra.mxu0 %v282
      %v373 = vpop.f32.mrf.mxu0
      %v374 = vadd.f32 %v305, %v373
      %v375 = vpop.f32.mrf.mxu0
      %376 = vmatprep.mubr.f32.mxu0 0.0
      %377 = vmatmul.mubr.f32.gmra.mxu0 %v283
      %v378 = vpop.f32.mrf.mxu0
      %v379 = vadd.f32 %v305, %v378
      %v380 = vpop.f32.mrf.mxu0
      %381 = vdwg.mxu0
      %v382 = vmax.f32 %v374, 0.0
      %v383 = vmax.f32 %v379, 0.0
      %v384 = vld [vmem:[%s3] sm:$0xff]
      %v385 = vld [vmem:[%s3 + $0x8] sm:$0xff]
      %v386 = vld [vmem:[%s3 + $0x10] sm:$0xff]
      %v387 = vld [vmem:[%s3 + $0x18] sm:$0xff]
      %v388 = vld [vmem:[%s3 + $0x20] sm:$0xff]
      %v389 = vld [vmem:[%s3 + $0x28] sm:$0xff]
      %v390 = vld [vmem:[%s3 + $0x30] sm:$0xff]
      %v391 = vld [vmem:[%s3 + $0x38] sm:$0xff]
      %v392 = vld [vmem:[%s3 + $0x40] sm:$0xff]
      %v393 = vld [vmem:[%s3 + $0x48] sm:$0xff]
      %v394 = vld [vmem:[%s3 + $0x50] sm:$0xff]
      %v395 = vld [vmem:[%s3 + $0x58] sm:$0xff]
      %v396 = vld [vmem:[%s3 + $0x60] sm:$0xff]
      %v397 = vld [vmem:[%s3 + $0x68] sm:$0xff]
      %v398 = vld [vmem:[%s3 + $0x70] sm:$0xff]
      %v399 = vld [vmem:[%s3 + $0x78] sm:$0xff]
      %v400 = vld [vmem:[%s4] sm:$0x1]
      %v402 = vlaneseq
      %v403 = vshrl.u32 %v402, 7
      %v404 = vsub.s32 0, %v403
      %v405 = vrot.slane %v400, %v404
      %407 = vmatprep.subr.mxu0 0.0
      %408 = vmatpush1.msra.mxu0 %v399
      %409 = vmatprep.subr.mxu0 0.0
      %410 = vmatpush1.msra.mxu0 %v398
      %411 = vmatprep.subr.mxu0 0.0
      %412 = vmatpush1.msra.mxu0 %v397
      %413 = vmatprep.subr.mxu0 0.0
      %414 = vmatpush1.msra.mxu0 %v396
      %415 = vmatprep.subr.mxu0 0.0
      %416 = vmatpush1.msra.mxu0 %v395
      %417 = vmatprep.subr.mxu0 0.0
      %418 = vmatpush1.msra.mxu0 %v394
      %419 = vmatprep.subr.mxu0 0.0
      %420 = vmatpush1.msra.mxu0 %v393
      %421 = vmatprep.subr.mxu0 0.0
      %422 = vmatpush1.msra.mxu0 %v392
      %423 = vmatprep.subr.mxu0 0.0
      %424 = vmatpush1.msra.mxu0 %v391
      %425 = vmatprep.subr.mxu0 0.0
      %426 = vmatpush1.msra.mxu0 %v390
      %427 = vmatprep.subr.mxu0 0.0
      %428 = vmatpush1.msra.mxu0 %v389
      %429 = vmatprep.subr.mxu0 0.0
      %430 = vmatpush1.msra.mxu0 %v388
      %431 = vmatprep.subr.mxu0 0.0
      %432 = vmatpush1.msra.mxu0 %v387
      %433 = vmatprep.subr.mxu0 0.0
      %434 = vmatpush1.msra.mxu0 %v386
      %435 = vmatprep.subr.mxu0 0.0
      %436 = vmatpush1.msra.mxu0 %v385
      %437 = vmatprep.subr.mxu0 0.0
      %438 = vmatpush1.msra.mxu0 %v384
      %439 = vmatprep.subr.mxu0 0.0
      %440 = vmatpush2.msra.mxu0 0.0
      %441 = vmatprep.subr.mxu0 0.0
      %442 = vmatpush2.msra.mxu0 0.0
      %443 = vmatprep.subr.mxu0 0.0
      %444 = vmatpush2.msra.mxu0 0.0
      %445 = vmatprep.subr.mxu0 0.0
      %446 = vmatpush2.msra.mxu0 0.0
      %447 = vmatprep.subr.mxu0 0.0
      %448 = vmatpush2.msra.mxu0 0.0
      %449 = vmatprep.subr.mxu0 0.0
      %450 = vmatpush2.msra.mxu0 0.0
      %451 = vmatprep.subr.mxu0 0.0
      %452 = vmatpush2.msra.mxu0 0.0
      %453 = vmatprep.subr.mxu0 0.0
      %454 = vmatpush2.msra.mxu0 0.0
      %455 = vmatprep.subr.mxu0 0.0
      %456 = vmatpush2.msra.mxu0 0.0
      %457 = vmatprep.subr.mxu0 0.0
      %458 = vmatpush2.msra.mxu0 0.0
      %459 = vmatprep.subr.mxu0 0.0
      %460 = vmatpush2.msra.mxu0 0.0
      %461 = vmatprep.subr.mxu0 0.0
      %462 = vmatpush2.msra.mxu0 0.0
      %463 = vmatprep.subr.mxu0 0.0
      %464 = vmatpush2.msra.mxu0 0.0
      %465 = vmatprep.subr.mxu0 0.0
      %466 = vmatpush2.msra.mxu0 0.0
      %467 = vmatprep.subr.mxu0 0.0
      %468 = vmatpush2.msra.mxu0 0.0
      %469 = vmatprep.subr.mxu0 0.0
      %470 = vmatpush2.msra.mxu0 0.0
      %471 = vmatprep.mubr.f32.mxu0 0.0
      %472 = vmatmul.mubr.f32.gmra.mxu0 %v382
      %v473 = vpop.f32.mrf.mxu0
      %v474 = vadd.f32 %v405, %v473
      %v475 = vpop.f32.mrf.mxu0
      %476 = vmatprep.mubr.f32.mxu0 0.0
      %477 = vmatmul.mubr.f32.gmra.mxu0 %v383
      %v478 = vpop.f32.mrf.mxu0
      %v479 = vadd.f32 %v405, %v478
      %v480 = vpop.f32.mrf.mxu0
      %481 = vdwg.mxu0
      %v482 = vadd.f32 %v474, %v282
      %v483 = vadd.f32 %v479, %v283
      %484 = vadd.xlane.f32.xlu0 %v482
      %v485 = vpop.xlane.xlu0 %484
      %486 = vadd.xlane.f32.xlu0 %v483
      %v487 = vpop.xlane.xlu0 %486
      %v488 = vrcp.pop 128.0
      %v489 = vmul.f32 %v485, %v488
      %v490 = vmul.f32 %v487, %v488
      %v491 = vsub.f32 %v482, %v489
      %v492 = vsub.f32 %v483, %v490
      %v493 = vmul.f32 %v491, %v491
      %v494 = vmul.f32 %v492, %v492
      %495 = vadd.xlane.f32.xlu0 %v493
      %v496 = vpop.xlane.xlu0 %495
      %497 = vadd.xlane.f32.xlu0 %v494
      %v498 = vpop.xlane.xlu0 %497
      %v499 = vmul.f32 %v496, %v488
      %v500 = vmul.f32 %v498, %v488
      %v501 = vadd.f32 %v499, 1e-05
      %v502 = vadd.f32 %v500, 1e-05
      %v503 = vrsqrt.pop %v501
      %v504 = vrsqrt.pop %v502
      %v505 = vmul.f32 %v491, %v503
      %v506 = vmul.f32 %v492, %v504
      %v507 = vld [vmem:[%s5] sm:$0x1]
      %v509 = vlaneseq
      %v510 = vshrl.u32 %v509, 7
      %v511 = vsub.s32 0, %v510
      %v512 = vrot.slane %v507, %v511
      %v514 = vmul.f32 %v505, %v512
      %v515 = vmul.f32 %v506, %v512
      %v516 = vld [vmem:[%s6] sm:$0x1]
      %v518 = vlaneseq
      %v519 = vshrl.u32 %v518, 7
      %v520 = vsub.s32 0, %v519
      %v521 = vrot.slane %v516, %v520
      %v523 = vadd.f32 %v514, %v521
      %v524 = vadd.f32 %v515, %v521
      %525 = vst [vmem:[%s280] sm:$0xff] %v523
      %526 = vst [vmem:[%s280 + $0x8] sm:$0xff] %v524
      %s527 = smul.u32 2, %s18
      %p528 = scmp.lt.s32.totalorder %s527, 3
      %s529 = scalar_select %p528, %s527, 3
      %s530 = smul.addr %s529, 8
      %s531 = scalar_lea.vmem %s7, %s530
      // Predicated region
      $region49: #{residual_tds_conv_encoder.5} parent=47 // pred_check
        %p532 = pneg %p188
      $region50: #{residual_tds_conv_encoder.5} parent=47 // pred_check_branch
        %534 = sbr.rel (%p532) target = $region52
      $region51: #{residual_tds_conv_encoder.5} parent=47 // pred_region
        %s535 = smul.u32 2, %s18
      $region52: #{residual_tds_conv_encoder.5} parent=47 // pred_fallthru
        _
    $region48: #{residual_tds_conv_encoder.5} parent=5 // pred_fallthru
      _
    %p536 = scmp.le.s32.totalorder 2, %s13
    // Predicated region
    $region53: #{residual_tds_conv_encoder.5} parent=5 // pred_check
      %p537 = pneg %p536
    $region54: #{residual_tds_conv_encoder.5} parent=5 // pred_check_branch
      %539 = sbr.rel (%p537) target = $region56
    $region55: #{residual_tds_conv_encoder.5} parent=5 // pred_region
      %s540 = ssub.s32 %s13, 2
      // Predicated region
      $region57: #{residual_tds_conv_encoder.5} parent=55 // pred_check
        %p541 = pneg %p194
      $region58: #{residual_tds_conv_encoder.5} parent=55 // pred_check_branch
        %543 = sbr.rel (%p541) target = $region60
      $region59: #{residual_tds_conv_encoder.5} parent=55 // pred_region
        %s544 = smul.u32 2, %s19
        %p545 = scmp.lt.s32.totalorder %s544, 3
        %s546 = scalar_select %p545, %s544, 3
        %s547 = smul.addr %s546, 8
        %s548 = scalar_lea.vmem %s7, %s547
      $region60: #{residual_tds_conv_encoder.5} parent=55 // pred_fallthru
        _
    $region56: #{residual_tds_conv_encoder.5} parent=5 // pred_fallthru
      _
  $region6: #{residual_tds_conv_encoder.5} parent=0 // loop_footer
    %s17 = sadd.s32 1, %s13
  $region7: #{residual_tds_conv_encoder.5} parent=0 // loop_footer_branch
    %12 = sbr.rel target = $region3
  $region8: #{residual_tds_conv_encoder.5} parent=0 // loop_exit
    _

// kernel: residual_tds_conv_encoder.4
$region0: #{residual_tds_conv_encoder.4}
  #allocation0 [shape = 'u32[]', space=smem, size = 0x4, offset = 0x4, fixed_abs, tag = 'smem constant byte address 0x4 - core index']
  #allocation1 [shape = 'u32[144,128]{1,0:T(1,128)}', space=vmem, size = 0x12000, scoped, tag = 'internal scratch']
  %s0 = inlined_call_operand.vmem [shape: f32[168,128], index: 0, kind: input, shape index: {}, may-alias: {0,1}]
  %s1 = inlined_call_operand.vmem [shape: f32[168,128], index: 1, kind: input, shape index: {}, may-alias: {0,1}]
  %s2 = inlined_call_operand.vmem [shape: f32[512,128], index: 2, kind: input, shape index: {}]
  %s3 = inlined_call_operand.vmem [shape: f32[1,128], index: 3, kind: input, shape index: {}]
  %s4 = inlined_call_operand.vmem [shape: f32[1,128], index: 4, kind: input, shape index: {}]
  %s5 = inlined_call_operand.vmem [shape: f32[1,128], index: 5, kind: input, shape index: {}]
  %s6 = inlined_call_operand.vmem [shape: f32[112,128], index: 6, kind: output, shape index: {}]
  %s7 = sld [smem:[#allocation0]]
  $region57: #{residual_tds_conv_encoder.4} parent=0
    _
  %s9 = ssub.s32 1, %s7
  %s10 = scalar_select 0, %s9, %s7
  loop: start=0, step=1, limit=4
  $region2: #{residual_tds_conv_encoder.4} parent=0 // loop_pre_header
    _
  $region3: #{residual_tds_conv_encoder.4} parent=0 // loop_header
    %s12 = sphi 0, %s16
    %p13 = scmp.ge.s32.totalorder %s12, 4
    %s22 = sphi 0, %s24
    %s25 = sphi 0, %s22
    %s26 = sphi 0, %s25
    %s42 = sphi 0, %s26
    %s50 = sphi 0, %s52
    %s53 = sphi 0, %s50
    %s54 = sphi 0, %s53
    %s70 = sphi 0, %s54
    %s74 = sphi 0, %s74
    %s76 = sphi 0, %s74
    %s77 = sphi 0, %s76
    %s91 = sphi 0, %s77
    %s95 = sphi 0, %s95
    %s97 = sphi 0, %s95
    %s98 = sphi 0, %s97
    %s112 = sphi 0, %s98
    %s116 = sphi 0, %s116
    %s118 = sphi 0, %s116
    %s119 = sphi 0, %s118
    %s133 = sphi 0, %s119
    %s137 = sphi 0, %s137
    %s139 = sphi 0, %s137
    %s140 = sphi 0, %s139
    %s154 = sphi 0, %s140
    %s160 = sphi 0, %s162
    %s163 = sphi 0, %s160
    %s164 = sphi 0, %s163
    %s180 = sphi 0, %s164
  $region4: #{residual_tds_conv_encoder.4} parent=0 // loop_header_branch
    %15 = sbr.rel (%p13) target = $region8
  $region5: #{residual_tds_conv_encoder.4} parent=0 // loop_body
    %s17 = ssub.s32 %s12, 1
    %s18 = ssub.s32 %s12, 2
    %s19 = sadd.s32 %s12, 1
    %s20 = ssub.s32 %s12, %s19
    %p21 = scmp.eq.s32.totalorder %s20, 0
    %s23 = sadd.s32 %s22, 1
    %s24 = scalar_select %p21, %s22, %s23
    %p27 = pneg %p21
    %p28 = scmp.eq.s32.totalorder %s12, 1
    %p29 = por %p27, %p28
    %p30 = scmp.ne.s32.totalorder %s22, %s25
    %p31 = scmp.eq.s32.totalorder %s12, 0
    %p32 = por %p30, %p31
    %p33 = scmp.ne.s32.totalorder %s22, %s25
    %p34 = scmp.eq.s32.totalorder %s17, 1
    %p35 = por %p33, %p34
    %p36 = scmp.ne.s32.totalorder %s25, %s26
    %p37 = scmp.eq.s32.totalorder %s17, 0
    %p38 = por %p36, %p37
    %p39 = scmp.ne.s32.totalorder %s25, %s26
    %p40 = scmp.eq.s32.totalorder %s18, 1
    %p41 = por %p39, %p40
    %p43 = scmp.ne.s32.totalorder %s26, %s42
    %p44 = scmp.eq.s32.totalorder %s18, 0
    %p45 = por %p43, %p44
    %s46 = sadd.s32 %s12, 1
    %s47 = sadd.s32 %s19, 1
    %s48 = ssub.s32 %s46, %s47
    %p49 = scmp.eq.s32.totalorder %s48, 0
    %s51 = sadd.s32 %s50, 1
    %s52 = scalar_select %p49, %s50, %s51
    %p55 = pneg %p49
    %p56 = scmp.eq.s32.totalorder %s12, 1
    %p57 = por %p55, %p56
    %p58 = scmp.ne.s32.totalorder %s50, %s53
    %p59 = scmp.eq.s32.totalorder %s12, 0
    %p60 = por %p58, %p59
    %p61 = scmp.ne.s32.totalorder %s50, %s53
    %p62 = scmp.eq.s32.totalorder %s17, 1
    %p63 = por %p61, %p62
    %p64 = scmp.ne.s32.totalorder %s53, %s54
    %p65 = scmp.eq.s32.totalorder %s17, 0
    %p66 = por %p64, %p65
    %p67 = scmp.ne.s32.totalorder %s53, %s54
    %p68 = scmp.eq.s32.totalorder %s18, 1
    %p69 = por %p67, %p68
    %p71 = scmp.ne.s32.totalorder %s54, %s70
    %p72 = scmp.eq.s32.totalorder %s18, 0
    %p73 = por %p71, %p72
    %s75 = sadd.s32 %s74, 1
    %p78 = scmp.eq.s32.totalorder %s12, 1
    %p79 = scmp.ne.s32.totalorder %s74, %s76
    %p80 = scmp.eq.s32.totalorder %s12, 0
    %p81 = por %p79, %p80
    %p82 = scmp.ne.s32.totalorder %s74, %s76
    %p83 = scmp.eq.s32.totalorder %s17, 1
    %p84 = por %p82, %p83
    %p85 = scmp.ne.s32.totalorder %s76, %s77
    %p86 = scmp.eq.s32.totalorder %s17, 0
    %p87 = por %p85, %p86
    %p88 = scmp.ne.s32.totalorder %s76, %s77
    %p89 = scmp.eq.s32.totalorder %s18, 1
    %p90 = por %p88, %p89
    %p92 = scmp.ne.s32.totalorder %s77, %s91
    %p93 = scmp.eq.s32.totalorder %s18, 0
    %p94 = por %p92, %p93
    %s96 = sadd.s32 %s95, 1
    %p99 = scmp.eq.s32.totalorder %s12, 1
    %p100 = scmp.ne.s32.totalorder %s95, %s97
    %p101 = scmp.eq.s32.totalorder %s12, 0
    %p102 = por %p100, %p101
    %p103 = scmp.ne.s32.totalorder %s95, %s97
    %p104 = scmp.eq.s32.totalorder %s17, 1
    %p105 = por %p103, %p104
    %p106 = scmp.ne.s32.totalorder %s97, %s98
    %p107 = scmp.eq.s32.totalorder %s17, 0
    %p108 = por %p106, %p107
    %p109 = scmp.ne.s32.totalorder %s97, %s98
    %p110 = scmp.eq.s32.totalorder %s18, 1
    %p111 = por %p109, %p110
    %p113 = scmp.ne.s32.totalorder %s98, %s112
    %p114 = scmp.eq.s32.totalorder %s18, 0
    %p115 = por %p113, %p114
    %s117 = sadd.s32 %s116, 1
    %p120 = scmp.eq.s32.totalorder %s12, 1
    %p121 = scmp.ne.s32.totalorder %s116, %s118
    %p122 = scmp.eq.s32.totalorder %s12, 0
    %p123 = por %p121, %p122
    %p124 = scmp.ne.s32.totalorder %s116, %s118
    %p125 = scmp.eq.s32.totalorder %s17, 1
    %p126 = por %p124, %p125
    %p127 = scmp.ne.s32.totalorder %s118, %s119
    %p128 = scmp.eq.s32.totalorder %s17, 0
    %p129 = por %p127, %p128
    %p130 = scmp.ne.s32.totalorder %s118, %s119
    %p131 = scmp.eq.s32.totalorder %s18, 1
    %p132 = por %p130, %p131
    %p134 = scmp.ne.s32.totalorder %s119, %s133
    %p135 = scmp.eq.s32.totalorder %s18, 0
    %p136 = por %p134, %p135
    %s138 = sadd.s32 %s137, 1
    %p141 = scmp.eq.s32.totalorder %s12, 1
    %p142 = scmp.ne.s32.totalorder %s137, %s139
    %p143 = scmp.eq.s32.totalorder %s12, 0
    %p144 = por %p142, %p143
    %p145 = scmp.ne.s32.totalorder %s137, %s139
    %p146 = scmp.eq.s32.totalorder %s17, 1
    %p147 = por %p145, %p146
    %p148 = scmp.ne.s32.totalorder %s139, %s140
    %p149 = scmp.eq.s32.totalorder %s17, 0
    %p150 = por %p148, %p149
    %p151 = scmp.ne.s32.totalorder %s139, %s140
    %p152 = scmp.eq.s32.totalorder %s18, 1
    %p153 = por %p151, %p152
    %p155 = scmp.ne.s32.totalorder %s140, %s154
    %p156 = scmp.eq.s32.totalorder %s18, 0
    %p157 = por %p155, %p156
    %s158 = ssub.s32 %s12, %s19
    %p159 = scmp.eq.s32.totalorder %s158, 0
    %s161 = sadd.s32 %s160, 1
    %s162 = scalar_select %p159, %s160, %s161
    %p165 = pneg %p159
    %p166 = scmp.eq.s32.totalorder %s12, 1
    %p167 = por %p165, %p166
    %p168 = scmp.ne.s32.totalorder %s160, %s163
    %p169 = scmp.eq.s32.totalorder %s12, 0
    %p170 = por %p168, %p169
    %p171 = scmp.ne.s32.totalorder %s160, %s163
    %p172 = scmp.eq.s32.totalorder %s17, 1
    %p173 = por %p171, %p172
    %p174 = scmp.ne.s32.totalorder %s163, %s164
    %p175 = scmp.eq.s32.totalorder %s17, 0
    %p176 = por %p174, %p175
    %p177 = scmp.ne.s32.totalorder %s163, %s164
    %p178 = scmp.eq.s32.totalorder %s18, 1
    %p179 = por %p177, %p178
    %p181 = scmp.ne.s32.totalorder %s164, %s180
    %p182 = scmp.eq.s32.totalorder %s18, 0
    %p183 = por %p181, %p182
    %p184 = scmp.le.s32.totalorder 1, %s12
    %p185 = scmp.lt.s32.totalorder %s12, 3
    %p186 = pnand %p184, %p185
    %p187 = pneg %p186
    // Predicated region
    $region9: #{residual_tds_conv_encoder.4} parent=5 // pred_check
      _
    $region10: #{residual_tds_conv_encoder.4} parent=5 // pred_check_branch
      %189 = sbr.rel (%p186) target = $region12
    $region11: #{residual_tds_conv_encoder.4} parent=5 // pred_region
      %s190 = ssub.s32 %s12, 1
      // Predicated region
      $region13: #{residual_tds_conv_encoder.4} parent=11 // pred_check
        %p191 = pneg %p87
      $region14: #{residual_tds_conv_encoder.4} parent=11 // pred_check_branch
        %193 = sbr.rel (%p191) target = $region16
      $region15: #{residual_tds_conv_encoder.4} parent=11 // pred_region
        _
      $region16: #{residual_tds_conv_encoder.4} parent=11 // pred_fallthru
        _
      // Predicated region
      $region17: #{residual_tds_conv_encoder.4} parent=11 // pred_check
        %p194 = pneg %p108
      $region18: #{residual_tds_conv_encoder.4} parent=11 // pred_check_branch
        %196 = sbr.rel (%p194) target = $region20
      $region19: #{residual_tds_conv_encoder.4} parent=11 // pred_region
        _
      $region20: #{residual_tds_conv_encoder.4} parent=11 // pred_fallthru
        _
      // Predicated region
      $region21: #{residual_tds_conv_encoder.4} parent=11 // pred_check
        %p197 = pneg %p129
      $region22: #{residual_tds_conv_encoder.4} parent=11 // pred_check_branch
        %199 = sbr.rel (%p197) target = $region24
      $region23: #{residual_tds_conv_encoder.4} parent=11 // pred_region
        _
      $region24: #{residual_tds_conv_encoder.4} parent=11 // pred_fallthru
        _
      // Predicated region
      $region25: #{residual_tds_conv_encoder.4} parent=11 // pred_check
        %p200 = pneg %p150
      $region26: #{residual_tds_conv_encoder.4} parent=11 // pred_check_branch
        %202 = sbr.rel (%p200) target = $region28
      $region27: #{residual_tds_conv_encoder.4} parent=11 // pred_region
        _
      $region28: #{residual_tds_conv_encoder.4} parent=11 // pred_fallthru
        _
    $region12: #{residual_tds_conv_encoder.4} parent=5 // pred_fallthru
      _
    %p203 = scmp.lt.s32.totalorder %s12, 2
    // Predicated region
    $region29: #{residual_tds_conv_encoder.4} parent=5 // pred_check
      %p204 = pneg %p203
    $region30: #{residual_tds_conv_encoder.4} parent=5 // pred_check_branch
      %206 = sbr.rel (%p204) target = $region32
    $region31: #{residual_tds_conv_encoder.4} parent=5 // pred_region
      // Predicated region
      $region33: #{residual_tds_conv_encoder.4} parent=31 // pred_check
        %p207 = pneg %p32
      $region34: #{residual_tds_conv_encoder.4} parent=31 // pred_check_branch
        %209 = sbr.rel (%p207) target = $region36
      $region35: #{residual_tds_conv_encoder.4} parent=31 // pred_region
        %s210 = smul.u32 7, %s12
        %p211 = scmp.lt.s32.totalorder %s210, 20
        %s212 = scalar_select %p211, %s210, 20
        %s213 = smul.addr %s212, 8
        %s214 = scalar_lea.vmem %s0, %s213
        %s215 = smul.u32 7, %s12
      $region36: #{residual_tds_conv_encoder.4} parent=31 // pred_fallthru
        _
      // Predicated region
      $region37: #{residual_tds_conv_encoder.4} parent=31 // pred_check
        %p216 = pneg %p60
      $region38: #{residual_tds_conv_encoder.4} parent=31 // pred_check_branch
        %218 = sbr.rel (%p216) target = $region40
      $region39: #{residual_tds_conv_encoder.4} parent=31 // pred_region
        %s219 = sadd.s32 %s12, 1
        %s220 = smul.u32 7, %s219
        %p221 = scmp.lt.s32.totalorder %s220, 20
        %s222 = scalar_select %p221, %s220, 20
        %s223 = smul.addr %s222, 8
        %s224 = scalar_lea.vmem %s1, %s223
        %s225 = sadd.s32 %s12, 1
        %s226 = smul.u32 7, %s225
      $region40: #{residual_tds_conv_encoder.4} parent=31 // pred_fallthru
        _
    $region32: #{residual_tds_conv_encoder.4} parent=5 // pred_fallthru
      _
    %p227 = scmp.le.s32.totalorder 1, %s12
    %p228 = scmp.lt.s32.totalorder %s12, 3
    %p229 = pnand %p227, %p228
    %p230 = pneg %p229
    // Predicated region
    $region41: #{residual_tds_conv_encoder.4} parent=5 // pred_check
      _
    $region42: #{residual_tds_conv_encoder.4} parent=5 // pred_check_branch
      %232 = sbr.rel (%p229) target = $region44
    $region43: #{residual_tds_conv_encoder.4} parent=5 // pred_region
      %s233 = ssub.s32 %s12, 1
      %s234 = smul.u32 7, %s17
      %p235 = scmp.lt.s32.totalorder %s234, 20
      %s236 = scalar_select %p235, %s234, 20
      %s237 = smul.addr %s236, 8
      %s238 = scalar_lea.vmem %s0, %s237
      %p239 = pneg %p38
      %p240 = pneg %p35
      %s241 = sadd.s32 %s17, 1
      %s242 = smul.u32 7, %s241
      %p243 = scmp.lt.s32.totalorder %s242, 20
      %s244 = scalar_select %p243, %s242, 20
      %s245 = smul.addr %s244, 8
      %s246 = scalar_lea.vmem %s1, %s245
      %p247 = pneg %p66
      %p248 = pneg %p63
      %p249 = pneg %p87
      %p250 = pneg %p84
      %p251 = pneg %p108
      %p252 = pneg %p105
      %p253 = pneg %p129
      %p254 = pneg %p126
      %p255 = pneg %p150
      %p256 = pneg %p147
      %p257 = pneg %p176
      %p258 = pneg %p173
      %s259 = smul.u32 7, %s17
      %p260 = scmp.lt.s32.totalorder %s259, 13
      %s261 = scalar_select %p260, %s259, 13
      %s262 = smul.addr %s261, 8
      %s263 = scalar_lea.vmem %s6, %s262
      %s264 = smul.u32 7, %s17
      %p265 = scmp.lt.s32.totalorder %s264, 20
      %s266 = scalar_select %p265, %s264, 20
      %s267 = smul.addr %s266, 8
      %s268 = scalar_lea.vmem %s0, %s267
      %s269 = smul.u32 7, %s17
      %s270 = sadd.s32 %s17, 1
      %s271 = smul.u32 7, %s270
      %p272 = scmp.lt.s32.totalorder %s271, 20
      %s273 = scalar_select %p272, %s271, 20
      %s274 = smul.addr %s273, 8
      %s275 = scalar_lea.vmem %s1, %s274
      %s276 = sadd.s32 %s17, 1
      %s277 = smul.u32 7, %s276
      %s278 = smul.u32 7, %s17
      %p279 = scmp.lt.s32.totalorder %s278, 13
      %s280 = scalar_select %p279, %s278, 13
      %s281 = smul.addr %s280, 8
      %s282 = scalar_lea.vmem %s6, %s281
      %s283 = smul.u32 7, %s17
      %v284 = vld [vmem:[%s268] sm:$0xff]
      %v285 = vld [vmem:[%s268 + $0x8] sm:$0xff]
      %v286 = vld [vmem:[%s268 + $0x10] sm:$0xff]
      %v287 = vld [vmem:[%s268 + $0x18] sm:$0xff]
      %v288 = vld [vmem:[%s268 + $0x20] sm:$0xff]
      %v289 = vld [vmem:[%s268 + $0x28] sm:$0xff]
      %v290 = vld [vmem:[%s268 + $0x30] sm:$0xff]
      %v291 = vld [vmem:[%s275] sm:$0xff]
      %v292 = vld [vmem:[%s275 + $0x8] sm:$0xff]
      %v293 = vld [vmem:[%s275 + $0x10] sm:$0xff]
      %v294 = vld [vmem:[%s2] sm:$0xff]
      %v295 = vld [vmem:[%s2 + $0x8] sm:$0xff]
      %v296 = vld [vmem:[%s2 + $0x10] sm:$0xff]
      %v297 = vld [vmem:[%s2 + $0x18] sm:$0xff]
      %v298 = vld [vmem:[%s2 + $0x20] sm:$0xff]
      %v299 = vld [vmem:[%s2 + $0x28] sm:$0xff]
      %v300 = vld [vmem:[%s2 + $0x30] sm:$0xff]
      %v301 = vld [vmem:[%s2 + $0x38] sm:$0xff]
      %v302 = vld [vmem:[%s2 + $0x40] sm:$0xff]
      %v303 = vld [vmem:[%s2 + $0x48] sm:$0xff]
      %v304 = vld [vmem:[%s2 + $0x50] sm:$0xff]
      %v305 = vld [vmem:[%s2 + $0x58] sm:$0xff]
      %v306 = vld [vmem:[%s2 + $0x60] sm:$0xff]
      %v307 = vld [vmem:[%s2 + $0x68] sm:$0xff]
      %v308 = vld [vmem:[%s2 + $0x70] sm:$0xff]
      %v309 = vld [vmem:[%s2 + $0x78] sm:$0xff]
      %v310 = vld [vmem:[%s2 + $0x80] sm:$0xff]
      %v311 = vld [vmem:[%s2 + $0x88] sm:$0xff]
      %v312 = vld [vmem:[%s2 + $0x90] sm:$0xff]
      %v313 = vld [vmem:[%s2 + $0x98] sm:$0xff]
      %v314 = vld [vmem:[%s2 + $0xa0] sm:$0xff]
      %v315 = vld [vmem:[%s2 + $0xa8] sm:$0xff]
      %v316 = vld [vmem:[%s2 + $0xb0] sm:$0xff]
      %v317 = vld [vmem:[%s2 + $0xb8] sm:$0xff]
      %v318 = vld [vmem:[%s2 + $0xc0] sm:$0xff]
      %v319 = vld [vmem:[%s2 + $0xc8] sm:$0xff]
      %v320 = vld [vmem:[%s2 + $0xd0] sm:$0xff]
      %v321 = vld [vmem:[%s2 + $0xd8] sm:$0xff]
      %v322 = vld [vmem:[%s2 + $0xe0] sm:$0xff]
      %v323 = vld [vmem:[%s2 + $0xe8] sm:$0xff]
      %v324 = vld [vmem:[%s2 + $0xf0] sm:$0xff]
      %v325 = vld [vmem:[%s2 + $0xf8] sm:$0xff]
      %326 = vmatprep.subr.mxu0 0.0
      %327 = vmatpush1.msra.mxu0 %v325
      %328 = vmatprep.subr.mxu0 0.0
      %329 = vmatpush1.msra.mxu0 %v324
      %330 = vmatprep.subr.mxu0 0.0
      %331 = vmatpush1.msra.mxu0 %v323
      %332 = vmatprep.subr.mxu0 0.0
      %333 = vmatpush1.msra.mxu0 %v322
      %334 = vmatprep.subr.mxu0 0.0
      %335 = vmatpush1.msra.mxu0 %v321
      %336 = vmatprep.subr.mxu0 0.0
      %337 = vmatpush1.msra.mxu0 %v320
      %338 = vmatprep.subr.mxu0 0.0
      %339 = vmatpush1.msra.mxu0 %v319
      %340 = vmatprep.subr.mxu0 0.0
      %341 = vmatpush1.msra.mxu0 %v318
      %342 = vmatprep.subr.mxu0 0.0
      %343 = vmatpush1.msra.mxu0 %v317
      %344 = vmatprep.subr.mxu0 0.0
      %345 = vmatpush1.msra.mxu0 %v316
      %346 = vmatprep.subr.mxu0 0.0
      %347 = vmatpush1.msra.mxu0 %v315
      %348 = vmatprep.subr.mxu0 0.0
      %349 = vmatpush1.msra.mxu0 %v314
      %350 = vmatprep.subr.mxu0 0.0
      %351 = vmatpush1.msra.mxu0 %v313
      %352 = vmatprep.subr.mxu0 0.0
      %353 = vmatpush1.msra.mxu0 %v312
      %354 = vmatprep.subr.mxu0 0.0
      %355 = vmatpush1.msra.mxu0 %v311
      %356 = vmatprep.subr.mxu0 0.0
      %357 = vmatpush1.msra.mxu0 %v310
      %358 = vmatprep.subr.mxu0 0.0
      %359 = vmatpush2.msra.mxu0 0.0
      %360 = vmatprep.subr.mxu0 0.0
      %361 = vmatpush2.msra.mxu0 0.0
      %362 = vmatprep.subr.mxu0 0.0
      %363 = vmatpush2.msra.mxu0 0.0
      %364 = vmatprep.subr.mxu0 0.0
      %365 = vmatpush2.msra.mxu0 0.0
      %366 = vmatprep.subr.mxu0 0.0
      %367 = vmatpush2.msra.mxu0 0.0
      %368 = vmatprep.subr.mxu0 0.0
      %369 = vmatpush2.msra.mxu0 0.0
      %370 = vmatprep.subr.mxu0 0.0
      %371 = vmatpush2.msra.mxu0 0.0
      %372 = vmatprep.subr.mxu0 0.0
      %373 = vmatpush2.msra.mxu0 0.0
      %374 = vmatprep.subr.mxu0 0.0
      %375 = vmatpush2.msra.mxu0 0.0
      %376 = vmatprep.subr.mxu0 0.0
      %377 = vmatpush2.msra.mxu0 0.0
      %378 = vmatprep.subr.mxu0 0.0
      %379 = vmatpush2.msra.mxu0 0.0
      %380 = vmatprep.subr.mxu0 0.0
      %381 = vmatpush2.msra.mxu0 0.0
      %382 = vmatprep.subr.mxu0 0.0
      %383 = vmatpush2.msra.mxu0 0.0
      %384 = vmatprep.subr.mxu0 0.0
      %385 = vmatpush2.msra.mxu0 0.0
      %386 = vmatprep.subr.mxu0 0.0
      %387 = vmatpush2.msra.mxu0 0.0
      %388 = vmatprep.subr.mxu0 0.0
      %389 = vmatpush2.msra.mxu0 0.0
      %390 = vmatprep.mubr.f32.mxu0 0.0
      %391 = vmatmul.mubr.f32.gmra.mxu0 %v285
      %v392 = vpop.f32.mrf.mxu0
      %v393 = vadd.f32 0.0, %v392
      %v394 = vpop.f32.mrf.mxu0
      %395 = vmatprep.mubr.f32.mxu0 0.0
      %396 = vmatmul.mubr.f32.gmra.mxu0 %v286
      %v397 = vpop.f32.mrf.mxu0
      %v398 = vadd.f32 0.0, %v397
      %v399 = vpop.f32.mrf.mxu0
      %400 = vmatprep.mubr.f32.mxu0 0.0
      %401 = vmatmul.mubr.f32.gmra.mxu0 %v287
      %v402 = vpop.f32.mrf.mxu0
      %v403 = vadd.f32 0.0, %v402
      %v404 = vpop.f32.mrf.mxu0
      %405 = vmatprep.mubr.f32.mxu0 0.0
      %406 = vmatmul.mubr.f32.gmra.mxu0 %v288
      %v407 = vpop.f32.mrf.mxu0
      %v408 = vadd.f32 0.0, %v407
      %v409 = vpop.f32.mrf.mxu0
      %410 = vmatprep.mubr.f32.mxu0 0.0
      %411 = vmatmul.mubr.f32.gmra.mxu0 %v289
      %v412 = vpop.f32.mrf.mxu0
      %v413 = vadd.f32 0.0, %v412
      %v414 = vpop.f32.mrf.mxu0
      %415 = vmatprep.mubr.f32.mxu0 0.0
      %416 = vmatmul.mubr.f32.gmra.mxu0 %v290
      %v417 = vpop.f32.mrf.mxu0
      %v418 = vadd.f32 0.0, %v417
      %v419 = vpop.f32.mrf.mxu0
      %420 = vmatprep.mubr.f32.mxu0 0.0
      %421 = vmatmul.mubr.f32.gmra.mxu0 %v291
      %v422 = vpop.f32.mrf.mxu0
      %v423 = vadd.f32 0.0, %v422
      %v424 = vpop.f32.mrf.mxu0
      %425 = vdwg.mxu0
      %426 = vmatprep.subr.mxu0 0.0
      %427 = vmatpush1.msra.mxu0 %v309
      %428 = vmatprep.subr.mxu0 0.0
      %429 = vmatpush1.msra.mxu0 %v308
      %430 = vmatprep.subr.mxu0 0.0
      %431 = vmatpush1.msra.mxu0 %v307
      %432 = vmatprep.subr.mxu0 0.0
      %433 = vmatpush1.msra.mxu0 %v306
      %434 = vmatprep.subr.mxu0 0.0
      %435 = vmatpush1.msra.mxu0 %v305
      %436 = vmatprep.subr.mxu0 0.0
      %437 = vmatpush1.msra.mxu0 %v304
      %438 = vmatprep.subr.mxu0 0.0
      %439 = vmatpush1.msra.mxu0 %v303
      %440 = vmatprep.subr.mxu0 0.0
      %441 = vmatpush1.msra.mxu0 %v302
      %442 = vmatprep.subr.mxu0 0.0
      %443 = vmatpush1.msra.mxu0 %v301
      %444 = vmatprep.subr.mxu0 0.0
      %445 = vmatpush1.msra.mxu0 %v300
      %446 = vmatprep.subr.mxu0 0.0
      %447 = vmatpush1.msra.mxu0 %v299
      %448 = vmatprep.subr.mxu0 0.0
      %449 = vmatpush1.msra.mxu0 %v298
      %450 = vmatprep.subr.mxu0 0.0
      %451 = vmatpush1.msra.mxu0 %v297
      %452 = vmatprep.subr.mxu0 0.0
      %453 = vmatpush1.msra.mxu0 %v296
      %454 = vmatprep.subr.mxu0 0.0
      %455 = vmatpush1.msra.mxu0 %v295
      %456 = vmatprep.subr.mxu0 0.0
      %457 = vmatpush1.msra.mxu0 %v294
      %458 = vmatprep.subr.mxu0 0.0
      %459 = vmatpush2.msra.mxu0 0.0
      %460 = vmatprep.subr.mxu0 0.0
      %461 = vmatpush2.msra.mxu0 0.0
      %462 = vmatprep.subr.mxu0 0.0
      %463 = vmatpush2.msra.mxu0 0.0
      %464 = vmatprep.subr.mxu0 0.0
      %465 = vmatpush2.msra.mxu0 0.0
      %466 = vmatprep.subr.mxu0 0.0
      %467 = vmatpush2.msra.mxu0 0.0
      %468 = vmatprep.subr.mxu0 0.0
      %469 = vmatpush2.msra.mxu0 0.0
      %470 = vmatprep.subr.mxu0 0.0
      %471 = vmatpush2.msra.mxu0 0.0
      %472 = vmatprep.subr.mxu0 0.0
      %473 = vmatpush2.msra.mxu0 0.0
      %474 = vmatprep.subr.mxu0 0.0
      %475 = vmatpush2.msra.mxu0 0.0
      %476 = vmatprep.subr.mxu0 0.0
      %477 = vmatpush2.msra.mxu0 0.0
      %478 = vmatprep.subr.mxu0 0.0
      %479 = vmatpush2.msra.mxu0 0.0
      %480 = vmatprep.subr.mxu0 0.0
      %481 = vmatpush2.msra.mxu0 0.0
      %482 = vmatprep.subr.mxu0 0.0
      %483 = vmatpush2.msra.mxu0 0.0
      %484 = vmatprep.subr.mxu0 0.0
      %485 = vmatpush2.msra.mxu0 0.0
      %486 = vmatprep.subr.mxu0 0.0
      %487 = vmatpush2.msra.mxu0 0.0
      %488 = vmatprep.subr.mxu0 0.0
      %489 = vmatpush2.msra.mxu0 0.0
      %490 = vmatprep.mubr.f32.mxu0 0.0
      %491 = vmatmul.mubr.f32.gmra.mxu0 %v284
      %v492 = vpop.f32.mrf.mxu0
      %v493 = vadd.f32 %v393, %v492
      %v494 = vpop.f32.mrf.mxu0
      %495 = vmatprep.mubr.f32.mxu0 0.0
      %496 = vmatmul.mubr.f32.gmra.mxu0 %v285
      %v497 = vpop.f32.mrf.mxu0
      %v498 = vadd.f32 %v398, %v497
      %v499 = vpop.f32.mrf.mxu0
      %500 = vmatprep.mubr.f32.mxu0 0.0
      %501 = vmatmul.mubr.f32.gmra.mxu0 %v286
      %v502 = vpop.f32.mrf.mxu0
      %v503 = vadd.f32 %v403, %v502
      %v504 = vpop.f32.mrf.mxu0
      %505 = vmatprep.mubr.f32.mxu0 0.0
      %506 = vmatmul.mubr.f32.gmra.mxu0 %v287
      %v507 = vpop.f32.mrf.mxu0
      %v508 = vadd.f32 %v408, %v507
      %v509 = vpop.f32.mrf.mxu0
      %510 = vmatprep.mubr.f32.mxu0 0.0
      %511 = vmatmul.mubr.f32.gmra.mxu0 %v288
      %v512 = vpop.f32.mrf.mxu0
      %v513 = vadd.f32 %v413, %v512
      %v514 = vpop.f32.mrf.mxu0
      %515 = vmatprep.mubr.f32.mxu0 0.0
      %516 = vmatmul.mubr.f32.gmra.mxu0 %v289
      %v517 = vpop.f32.mrf.mxu0
      %v518 = vadd.f32 %v418, %v517
      %v519 = vpop.f32.mrf.mxu0
      %520 = vmatprep.mubr.f32.mxu0 0.0
      %521 = vmatmul.mubr.f32.gmra.mxu0 %v290
      %v522 = vpop.f32.mrf.mxu0
      %v523 = vadd.f32 %v423, %v522
      %v524 = vpop.f32.mrf.mxu0
      %525 = vdwg.mxu0
      %v526 = vmax.f32 %v284, %v285
      %v527 = vmax.f32 %v285, %v286
      %v528 = vmax.f32 %v286, %v287
      %v529 = vmax.f32 %v287, %v288
      %v530 = vmax.f32 %v288, %v289
      %v531 = vmax.f32 %v289, %v290
      %v532 = vmax.f32 %v290, %v291
      %v533 = vld [vmem:[%s2 + $0x100] sm:$0xff]
      %v534 = vld [vmem:[%s2 + $0x108] sm:$0xff]
      %v535 = vld [vmem:[%s2 + $0x110] sm:$0xff]
      %v536 = vld [vmem:[%s2 + $0x118] sm:$0xff]
      %v537 = vld [vmem:[%s2 + $0x120] sm:$0xff]
      %v538 = vld [vmem:[%s2 + $0x128] sm:$0xff]
      %v539 = vld [vmem:[%s2 + $0x130] sm:$0xff]
      %v540 = vld [vmem:[%s2 + $0x138] sm:$0xff]
      %v541 = vld [vmem:[%s2 + $0x140] sm:$0xff]
      %v542 = vld [vmem:[%s2 + $0x148] sm:$0xff]
      %v543 = vld [vmem:[%s2 + $0x150] sm:$0xff]
      %v544 = vld [vmem:[%s2 + $0x158] sm:$0xff]
      %v545 = vld [vmem:[%s2 + $0x160] sm:$0xff]
      %v546 = vld [vmem:[%s2 + $0x168] sm:$0xff]
      %v547 = vld [vmem:[%s2 + $0x170] sm:$0xff]
      %v548 = vld [vmem:[%s2 + $0x178] sm:$0xff]
      %549 = vmatprep.subr.mxu0 0.0
      %550 = vmatpush1.msra.mxu0 %v548
      %551 = vmatprep.subr.mxu0 0.0
      %552 = vmatpush1.msra.mxu0 %v547
      %553 = vmatprep.subr.mxu0 0.0
      %554 = vmatpush1.msra.mxu0 %v546
      %555 = vmatprep.subr.mxu0 0.0
      %556 = vmatpush1.msra.mxu0 %v545
      %557 = vmatprep.subr.mxu0 0.0
      %558 = vmatpush1.msra.mxu0 %v544
      %559 = vmatprep.subr.mxu0 0.0
      %560 = vmatpush1.msra.mxu0 %v543
      %561 = vmatprep.subr.mxu0 0.0
      %562 = vmatpush1.msra.mxu0 %v542
      %563 = vmatprep.subr.mxu0 0.0
      %564 = vmatpush1.msra.mxu0 %v541
      %565 = vmatprep.subr.mxu0 0.0
      %566 = vmatpush1.msra.mxu0 %v540
      %567 = vmatprep.subr.mxu0 0.0
      %568 = vmatpush1.msra.mxu0 %v539
      %569 = vmatprep.subr.mxu0 0.0
      %570 = vmatpush1.msra.mxu0 %v538
      %571 = vmatprep.subr.mxu0 0.0
      %572 = vmatpush1.msra.mxu0 %v537
      %573 = vmatprep.subr.mxu0 0.0
      %574 = vmatpush1.msra.mxu0 %v536
      %575 = vmatprep.subr.mxu0 0.0
      %576 = vmatpush1.msra.mxu0 %v535
      %577 = vmatprep.subr.mxu0 0.0
      %578 = vmatpush1.msra.mxu0 %v534
      %579 = vmatprep.subr.mxu0 0.0
      %580 = vmatpush1.msra.mxu0 %v533
      %581 = vmatprep.subr.mxu0 0.0
      %582 = vmatpush2.msra.mxu0 0.0
      %583 = vmatprep.subr.mxu0 0.0
      %584 = vmatpush2.msra.mxu0 0.0
      %585 = vmatprep.subr.mxu0 0.0
      %586 = vmatpush2.msra.mxu0 0.0
      %587 = vmatprep.subr.mxu0 0.0
      %588 = vmatpush2.msra.mxu0 0.0
      %589 = vmatprep.subr.mxu0 0.0
      %590 = vmatpush2.msra.mxu0 0.0
      %591 = vmatprep.subr.mxu0 0.0
      %592 = vmatpush2.msra.mxu0 0.0
      %593 = vmatprep.subr.mxu0 0.0
      %594 = vmatpush2.msra.mxu0 0.0
      %595 = vmatprep.subr.mxu0 0.0
      %596 = vmatpush2.msra.mxu0 0.0
      %597 = vmatprep.subr.mxu0 0.0
      %598 = vmatpush2.msra.mxu0 0.0
      %599 = vmatprep.subr.mxu0 0.0
      %600 = vmatpush2.msra.mxu0 0.0
      %601 = vmatprep.subr.mxu0 0.0
      %602 = vmatpush2.msra.mxu0 0.0
      %603 = vmatprep.subr.mxu0 0.0
      %604 = vmatpush2.msra.mxu0 0.0
      %605 = vmatprep.subr.mxu0 0.0
      %606 = vmatpush2.msra.mxu0 0.0
      %607 = vmatprep.subr.mxu0 0.0
      %608 = vmatpush2.msra.mxu0 0.0
      %609 = vmatprep.subr.mxu0 0.0
      %610 = vmatpush2.msra.mxu0 0.0
      %611 = vmatprep.subr.mxu0 0.0
      %612 = vmatpush2.msra.mxu0 0.0
      %613 = vmatprep.mubr.f32.mxu0 0.0
      %614 = vmatmul.mubr.f32.gmra.mxu0 %v286
      %v615 = vpop.f32.mrf.mxu0
      %v616 = vadd.f32 0.0, %v615
      %v617 = vpop.f32.mrf.mxu0
      %618 = vmatprep.mubr.f32.mxu0 0.0
      %619 = vmatmul.mubr.f32.gmra.mxu0 %v287
      %v620 = vpop.f32.mrf.mxu0
      %v621 = vadd.f32 0.0, %v620
      %v622 = vpop.f32.mrf.mxu0
      %623 = vmatprep.mubr.f32.mxu0 0.0
      %624 = vmatmul.mubr.f32.gmra.mxu0 %v288
      %v625 = vpop.f32.mrf.mxu0
      %v626 = vadd.f32 0.0, %v625
      %v627 = vpop.f32.mrf.mxu0
      %628 = vmatprep.mubr.f32.mxu0 0.0
      %629 = vmatmul.mubr.f32.gmra.mxu0 %v289
      %v630 = vpop.f32.mrf.mxu0
      %v631 = vadd.f32 0.0, %v630
      %v632 = vpop.f32.mrf.mxu0
      %633 = vmatprep.mubr.f32.mxu0 0.0
      %634 = vmatmul.mubr.f32.gmra.mxu0 %v290
      %v635 = vpop.f32.mrf.mxu0
      %v636 = vadd.f32 0.0, %v635
      %v637 = vpop.f32.mrf.mxu0
      %638 = vmatprep.mubr.f32.mxu0 0.0
      %639 = vmatmul.mubr.f32.gmra.mxu0 %v291
      %v640 = vpop.f32.mrf.mxu0
      %v641 = vadd.f32 0.0, %v640
      %v642 = vpop.f32.mrf.mxu0
      %643 = vmatprep.mubr.f32.mxu0 0.0
      %644 = vmatmul.mubr.f32.gmra.mxu0 %v292
      %v645 = vpop.f32.mrf.mxu0
      %v646 = vadd.f32 0.0, %v645
      %v647 = vpop.f32.mrf.mxu0
      %648 = vdwg.mxu0
      %v649 = vadd.f32 %v493, %v616
      %v650 = vadd.f32 %v498, %v621
      %v651 = vadd.f32 %v503, %v626
      %v652 = vadd.f32 %v508, %v631
      %v653 = vadd.f32 %v513, %v636
      %v654 = vadd.f32 %v518, %v641
      %v655 = vadd.f32 %v523, %v646
      %v656 = vmax.f32 %v526, %v286
      %v657 = vmax.f32 %v527, %v287
      %v658 = vmax.f32 %v528, %v288
      %v659 = vmax.f32 %v529, %v289
      %v660 = vmax.f32 %v530, %v290
      %v661 = vmax.f32 %v531, %v291
      %v662 = vmax.f32 %v532, %v292
      %v663 = vld [vmem:[%s2 + $0x180] sm:$0xff]
      %v664 = vld [vmem:[%s2 + $0x188] sm:$0xff]
      %v665 = vld [vmem:[%s2 + $0x190] sm:$0xff]
      %v666 = vld [vmem:[%s2 + $0x198] sm:$0xff]
      %v667 = vld [vmem:[%s2 + $0x1a0] sm:$0xff]
      %v668 = vld [vmem:[%s2 + $0x1a8] sm:$0xff]
      %v669 = vld [vmem:[%s2 + $0x1b0] sm:$0xff]
      %v670 = vld [vmem:[%s2 + $0x1b8] sm:$0xff]
      %v671 = vld [vmem:[%s2 + $0x1c0] sm:$0xff]
      %v672 = vld [vmem:[%s2 + $0x1c8] sm:$0xff]
      %v673 = vld [vmem:[%s2 + $0x1d0] sm:$0xff]
      %v674 = vld [vmem:[%s2 + $0x1d8] sm:$0xff]
      %v675 = vld [vmem:[%s2 + $0x1e0] sm:$0xff]
      %v676 = vld [vmem:[%s2 + $0x1e8] sm:$0xff]
      %v677 = vld [vmem:[%s2 + $0x1f0] sm:$0xff]
      %v678 = vld [vmem:[%s2 + $0x1f8] sm:$0xff]
      %679 = vmatprep.subr.mxu0 0.0
      %680 = vmatpush1.msra.mxu0 %v678
      %681 = vmatprep.subr.mxu0 0.0
      %682 = vmatpush1.msra.mxu0 %v677
      %683 = vmatprep.subr.mxu0 0.0
      %684 = vmatpush1.msra.mxu0 %v676
      %685 = vmatprep.subr.mxu0 0.0
      %686 = vmatpush1.msra.mxu0 %v675
      %687 = vmatprep.subr.mxu0 0.0
      %688 = vmatpush1.msra.mxu0 %v674
      %689 = vmatprep.subr.mxu0 0.0
      %690 = vmatpush1.msra.mxu0 %v673
      %691 = vmatprep.subr.mxu0 0.0
      %692 = vmatpush1.msra.mxu0 %v672
      %693 = vmatprep.subr.mxu0 0.0
      %694 = vmatpush1.msra.mxu0 %v671
      %695 = vmatprep.subr.mxu0 0.0
      %696 = vmatpush1.msra.mxu0 %v670
      %697 = vmatprep.subr.mxu0 0.0
      %698 = vmatpush1.msra.mxu0 %v669
      %699 = vmatprep.subr.mxu0 0.0
      %700 = vmatpush1.msra.mxu0 %v668
      %701 = vmatprep.subr.mxu0 0.0
      %702 = vmatpush1.msra.mxu0 %v667
      %703 = vmatprep.subr.mxu0 0.0
      %704 = vmatpush1.msra.mxu0 %v666
      %705 = vmatprep.subr.mxu0 0.0
      %706 = vmatpush1.msra.mxu0 %v665
      %707 = vmatprep.subr.mxu0 0.0
      %708 = vmatpush1.msra.mxu0 %v664
      %709 = vmatprep.subr.mxu0 0.0
      %710 = vmatpush1.msra.mxu0 %v663
      %711 = vmatprep.subr.mxu0 0.0
      %712 = vmatpush2.msra.mxu0 0.0
      %713 = vmatprep.subr.mxu0 0.0
      %714 = vmatpush2.msra.mxu0 0.0
      %715 = vmatprep.subr.mxu0 0.0
      %716 = vmatpush2.msra.mxu0 0.0
      %717 = vmatprep.subr.mxu0 0.0
      %718 = vmatpush2.msra.mxu0 0.0
      %719 = vmatprep.subr.mxu0 0.0
      %720 = vmatpush2.msra.mxu0 0.0
      %721 = vmatprep.subr.mxu0 0.0
      %722 = vmatpush2.msra.mxu0 0.0
      %723 = vmatprep.subr.mxu0 0.0
      %724 = vmatpush2.msra.mxu0 0.0
      %725 = vmatprep.subr.mxu0 0.0
      %726 = vmatpush2.msra.mxu0 0.0
      %727 = vmatprep.subr.mxu0 0.0
      %728 = vmatpush2.msra.mxu0 0.0
      %729 = vmatprep.subr.mxu0 0.0
      %730 = vmatpush2.msra.mxu0 0.0
      %731 = vmatprep.subr.mxu0 0.0
      %732 = vmatpush2.msra.mxu0 0.0
      %733 = vmatprep.subr.mxu0 0.0
      %734 = vmatpush2.msra.mxu0 0.0
      %735 = vmatprep.subr.mxu0 0.0
      %736 = vmatpush2.msra.mxu0 0.0
      %737 = vmatprep.subr.mxu0 0.0
      %738 = vmatpush2.msra.mxu0 0.0
      %739 = vmatprep.subr.mxu0 0.0
      %740 = vmatpush2.msra.mxu0 0.0
      %741 = vmatprep.subr.mxu0 0.0
      %742 = vmatpush2.msra.mxu0 0.0
      %743 = vmatprep.mubr.f32.mxu0 0.0
      %744 = vmatmul.mubr.f32.gmra.mxu0 %v287
      %v745 = vpop.f32.mrf.mxu0
      %v746 = vadd.f32 0.0, %v745
      %v747 = vpop.f32.mrf.mxu0
      %748 = vmatprep.mubr.f32.mxu0 0.0
      %749 = vmatmul.mubr.f32.gmra.mxu0 %v288
      %v750 = vpop.f32.mrf.mxu0
      %v751 = vadd.f32 0.0, %v750
      %v752 = vpop.f32.mrf.mxu0
      %753 = vmatprep.mubr.f32.mxu0 0.0
      %754 = vmatmul.mubr.f32.gmra.mxu0 %v289
      %v755 = vpop.f32.mrf.mxu0
      %v756 = vadd.f32 0.0, %v755
      %v757 = vpop.f32.mrf.mxu0
      %758 = vmatprep.mubr.f32.mxu0 0.0
      %759 = vmatmul.mubr.f32.gmra.mxu0 %v290
      %v760 = vpop.f32.mrf.mxu0
      %v761 = vadd.f32 0.0, %v760
      %v762 = vpop.f32.mrf.mxu0
      %763 = vmatprep.mubr.f32.mxu0 0.0
      %764 = vmatmul.mubr.f32.gmra.mxu0 %v291
      %v765 = vpop.f32.mrf.mxu0
      %v766 = vadd.f32 0.0, %v765
      %v767 = vpop.f32.mrf.mxu0
      %768 = vmatprep.mubr.f32.mxu0 0.0
      %769 = vmatmul.mubr.f32.gmra.mxu0 %v292
      %v770 = vpop.f32.mrf.mxu0
      %v771 = vadd.f32 0.0, %v770
      %v772 = vpop.f32.mrf.mxu0
      %773 = vmatprep.mubr.f32.mxu0 0.0
      %774 = vmatmul.mubr.f32.gmra.mxu0 %v293
      %v775 = vpop.f32.mrf.mxu0
      %v776 = vadd.f32 0.0, %v775
      %v777 = vpop.f32.mrf.mxu0
      %778 = vdwg.mxu0
      %v779 = vadd.f32 %v649, %v746
      %v780 = vadd.f32 %v650, %v751
      %v781 = vadd.f32 %v651, %v756
      %v782 = vadd.f32 %v652, %v761
      %v783 = vadd.f32 %v653, %v766
      %v784 = vadd.f32 %v654, %v771
      %v785 = vadd.f32 %v655, %v776
      %v786 = vmax.f32 %v656, %v287
      %v787 = vmax.f32 %v657, %v288
      %v788 = vmax.f32 %v658, %v289
      %v789 = vmax.f32 %v659, %v290
      %v790 = vmax.f32 %v660, %v291
      %v791 = vmax.f32 %v661, %v292
      %v792 = vmax.f32 %v662, %v293
      %v793 = vld [vmem:[%s3] sm:$0x1]
      %v795 = vlaneseq
      %v796 = vshrl.u32 %v795, 7
      %v797 = vsub.s32 0, %v796
      %v798 = vrot.slane %v793, %v797
      %v800 = vadd.f32 %v779, %v798
      %v801 = vadd.f32 %v780, %v798
      %v802 = vadd.f32 %v781, %v798
      %v803 = vadd.f32 %v782, %v798
      %v804 = vadd.f32 %v783, %v798
      %v805 = vadd.f32 %v784, %v798
      %v806 = vadd.f32 %v785, %v798
      %v807 = vmax.f32 %v800, 0.0
      %v808 = vmax.f32 %v801, 0.0
      %v809 = vmax.f32 %v802, 0.0
      %v810 = vmax.f32 %v803, 0.0
      %v811 = vmax.f32 %v804, 0.0
      %v812 = vmax.f32 %v805, 0.0
      %v813 = vmax.f32 %v806, 0.0
      %v814 = vadd.f32 %v807, %v786
      %v815 = vadd.f32 %v808, %v787
      %v816 = vadd.f32 %v809, %v788
      %v817 = vadd.f32 %v810, %v789
      %v818 = vadd.f32 %v811, %v790
      %v819 = vadd.f32 %v812, %v791
      %v820 = vadd.f32 %v813, %v792
      %v821 = vadd.f32 %v814, %v287
      %v822 = vadd.f32 %v815, %v288
      %v823 = vadd.f32 %v816, %v289
      %v824 = vadd.f32 %v817, %v290
      %v825 = vadd.f32 %v818, %v291
      %v826 = vadd.f32 %v819, %v292
      %v827 = vadd.f32 %v820, %v293
      %828 = vadd.xlane.f32.xlu0 %v821
      %v829 = vpop.xlane.xlu0 %828
      %830 = vadd.xlane.f32.xlu0 %v822
      %v831 = vpop.xlane.xlu0 %830
      %832 = vadd.xlane.f32.xlu0 %v823
      %v833 = vpop.xlane.xlu0 %832
      %834 = vadd.xlane.f32.xlu0 %v824
      %v835 = vpop.xlane.xlu0 %834
      %836 = vadd.xlane.f32.xlu0 %v825
      %v837 = vpop.xlane.xlu0 %836
      %838 = vadd.xlane.f32.xlu0 %v826
      %v839 = vpop.xlane.xlu0 %838
      %840 = vadd.xlane.f32.xlu0 %v827
      %v841 = vpop.xlane.xlu0 %840
      %v842 = vrcp.pop 128.0
      %v843 = vmul.f32 %v829, %v842
      %v844 = vmul.f32 %v831, %v842
      %v845 = vmul.f32 %v833, %v842
      %v846 = vmul.f32 %v835, %v842
      %v847 = vmul.f32 %v837, %v842
      %v848 = vmul.f32 %v839, %v842
      %v849 = vmul.f32 %v841, %v842
      %v850 = vsub.f32 %v821, %v843
      %v851 = vsub.f32 %v822, %v844
      %v852 = vsub.f32 %v823, %v845
      %v853 = vsub.f32 %v824, %v846
      %v854 = vsub.f32 %v825, %v847
      %v855 = vsub.f32 %v826, %v848
      %v856 = vsub.f32 %v827, %v849
      %v857 = vmul.f32 %v850, %v850
      %v858 = vmul.f32 %v851, %v851
      %v859 = vmul.f32 %v852, %v852
      %v860 = vmul.f32 %v853, %v853
      %v861 = vmul.f32 %v854, %v854
      %v862 = vmul.f32 %v855, %v855
      %v863 = vmul.f32 %v856, %v856
      %864 = vadd.xlane.f32.xlu0 %v857
      %v865 = vpop.xlane.xlu0 %864
      %866 = vadd.xlane.f32.xlu0 %v858
      %v867 = vpop.xlane.xlu0 %866
      %868 = vadd.xlane.f32.xlu0 %v859
      %v869 = vpop.xlane.xlu0 %868
      %870 = vadd.xlane.f32.xlu0 %v860
      %v871 = vpop.xlane.xlu0 %870
      %872 = vadd.xlane.f32.xlu0 %v861
      %v873 = vpop.xlane.xlu0 %872
      %874 = vadd.xlane.f32.xlu0 %v862
      %v875 = vpop.xlane.xlu0 %874
      %876 = vadd.xlane.f32.xlu0 %v863
      %v877 = vpop.xlane.xlu0 %876
      %v878 = vmul.f32 %v865, %v842
      %v879 = vmul.f32 %v867, %v842
      %v880 = vmul.f32 %v869, %v842
      %v881 = vmul.f32 %v871, %v842
      %v882 = vmul.f32 %v873, %v842
      %v883 = vmul.f32 %v875, %v842
      %v884 = vmul.f32 %v877, %v842
      %v885 = vadd.f32 %v878, 1e-05
      %v886 = vadd.f32 %v879, 1e-05
      %v887 = vadd.f32 %v880, 1e-05
      %v888 = vadd.f32 %v881, 1e-05
      %v889 = vadd.f32 %v882, 1e-05
      %v890 = vadd.f32 %v883, 1e-05
      %v891 = vadd.f32 %v884, 1e-05
      %v892 = vrsqrt.pop %v885
      %v893 = vrsqrt.pop %v886
      %v894 = vrsqrt.pop %v887
      %v895 = vrsqrt.pop %v888
      %v896 = vrsqrt.pop %v889
      %v897 = vrsqrt.pop %v890
      %v898 = vrsqrt.pop %v891
      %v899 = vmul.f32 %v850, %v892
      %v900 = vmul.f32 %v851, %v893
      %v901 = vmul.f32 %v852, %v894
      %v902 = vmul.f32 %v853, %v895
      %v903 = vmul.f32 %v854, %v896
      %v904 = vmul.f32 %v855, %v897
      %v905 = vmul.f32 %v856, %v898
      %v906 = vld [vmem:[%s4] sm:$0x1]
      %v908 = vlaneseq
      %v909 = vshrl.u32 %v908, 7
      %v910 = vsub.s32 0, %v909
      %v911 = vrot.slane %v906, %v910
      %v913 = vmul.f32 %v899, %v911
      %v914 = vmul.f32 %v900, %v911
      %v915 = vmul.f32 %v901, %v911
      %v916 = vmul.f32 %v902, %v911
      %v917 = vmul.f32 %v903, %v911
      %v918 = vmul.f32 %v904, %v911
      %v919 = vmul.f32 %v905, %v911
      %v920 = vld [vmem:[%s5] sm:$0x1]
      %v922 = vlaneseq
      %v923 = vshrl.u32 %v922, 7
      %v924 = vsub.s32 0, %v923
      %v925 = vrot.slane %v920, %v924
      %v927 = vadd.f32 %v913, %v925
      %v928 = vadd.f32 %v914, %v925
      %v929 = vadd.f32 %v915, %v925
      %v930 = vadd.f32 %v916, %v925
      %v931 = vadd.f32 %v917, %v925
      %v932 = vadd.f32 %v918, %v925
      %v933 = vadd.f32 %v919, %v925
      %934 = vst [vmem:[%s282] sm:$0xff] %v927
      %935 = vst [vmem:[%s282 + $0x8] sm:$0xff] %v928
      %936 = vst [vmem:[%s282 + $0x10] sm:$0xff] %v929
      %937 = vst [vmem:[%s282 + $0x18] sm:$0xff] %v930
      %938 = vst [vmem:[%s282 + $0x20] sm:$0xff] %v931
      %939 = vst [vmem:[%s282 + $0x28] sm:$0xff] %v932
      %940 = vst [vmem:[%s282 + $0x30] sm:$0xff] %v933
      %s941 = smul.u32 7, %s17
      %p942 = scmp.lt.s32.totalorder %s941, 13
      %s943 = scalar_select %p942, %s941, 13
      %s944 = smul.addr %s943, 8
      %s945 = scalar_lea.vmem %s6, %s944
      // Predicated region
      $region45: #{residual_tds_conv_encoder.4} parent=43 // pred_check
        %p946 = pneg %p173
      $region46: #{residual_tds_conv_encoder.4} parent=43 // pred_check_branch
        %948 = sbr.rel (%p946) target = $region48
      $region47: #{residual_tds_conv_encoder.4} parent=43 // pred_region
        %s949 = smul.u32 7, %s17
      $region48: #{residual_tds_conv_encoder.4} parent=43 // pred_fallthru
        _
    $region44: #{residual_tds_conv_encoder.4} parent=5 // pred_fallthru
      _
    %p950 = scmp.le.s32.totalorder 2, %s12
    // Predicated region
    $region49: #{residual_tds_conv_encoder.4} parent=5 // pred_check
      %p951 = pneg %p950
    $region50: #{residual_tds_conv_encoder.4} parent=5 // pred_check_branch
      %953 = sbr.rel (%p951) target = $region52
    $region51: #{residual_tds_conv_encoder.4} parent=5 // pred_region
      %s954 = ssub.s32 %s12, 2
      // Predicated region
      $region53: #{residual_tds_conv_encoder.4} parent=51 // pred_check
        %p955 = pneg %p179
      $region54: #{residual_tds_conv_encoder.4} parent=51 // pred_check_branch
        %957 = sbr.rel (%p955) target = $region56
      $region55: #{residual_tds_conv_encoder.4} parent=51 // pred_region
        %s958 = smul.u32 7, %s18
        %p959 = scmp.lt.s32.totalorder %s958, 13
        %s960 = scalar_select %p959, %s958, 13
        %s961 = smul.addr %s960, 8
        %s962 = scalar_lea.vmem %s6, %s961
      $region56: #{residual_tds_conv_encoder.4} parent=51 // pred_fallthru
        _
    $region52: #{residual_tds_conv_encoder.4} parent=5 // pred_fallthru
      _
  $region6: #{residual_tds_conv_encoder.4} parent=0 // loop_footer
    %s16 = sadd.s32 1, %s12
  $region7: #{residual_tds_conv_encoder.4} parent=0 // loop_footer_branch
    %11 = sbr.rel target = $region3
  $region8: #{residual_tds_conv_encoder.4} parent=0 // loop_exit
    _

// kernel: residual_tds_conv_encoder.6
$region0: #{residual_tds_conv_encoder.6}
  #allocation0 [shape = 'u32[]', space=smem, size = 0x4, offset = 0x4, fixed_abs, tag = 'smem constant byte address 0x4 - core index']
  #allocation1 [shape = 'u32[144,128]{1,0:T(1,128)}', space=vmem, size = 0x12000, scoped, tag = 'internal scratch']
  %s0 = inlined_call_operand.vmem [shape: f32[120,128], index: 0, kind: input, shape index: {}, may-alias: {0,1}]
  %s1 = inlined_call_operand.vmem [shape: f32[120,128], index: 1, kind: input, shape index: {}, may-alias: {0,1}]
  %s2 = inlined_call_operand.vmem [shape: f32[512,128], index: 2, kind: input, shape index: {}]
  %s3 = inlined_call_operand.vmem [shape: f32[1,128], index: 3, kind: input, shape index: {}]
  %s4 = inlined_call_operand.vmem [shape: f32[1,128], index: 4, kind: input, shape index: {}]
  %s5 = inlined_call_operand.vmem [shape: f32[1,128], index: 5, kind: input, shape index: {}]
  %s6 = inlined_call_operand.vmem [shape: f32[80,128], index: 6, kind: output, shape index: {}]
  %s7 = sld [smem:[#allocation0]]
  $region57: #{residual_tds_conv_encoder.6} parent=0
    _
  %s9 = ssub.s32 1, %s7
  %s10 = scalar_select 0, %s9, %s7
  loop: start=0, step=1, limit=4
  $region2: #{residual_tds_conv_encoder.6} parent=0 // loop_pre_header
    _
  $region3: #{residual_tds_conv_encoder.6} parent=0 // loop_header
    %s12 = sphi 0, %s16
    %p13 = scmp.ge.s32.totalorder %s12, 4
    %s22 = sphi 0, %s24
    %s25 = sphi 0, %s22
    %s26 = sphi 0, %s25
    %s42 = sphi 0, %s26
    %s50 = sphi 0, %s52
    %s53 = sphi 0, %s50
    %s54 = sphi 0, %s53
    %s70 = sphi 0, %s54
    %s74 = sphi 0, %s74
    %s76 = sphi 0, %s74
    %s77 = sphi 0, %s76
    %s91 = sphi 0, %s77
    %s95 = sphi 0, %s95
    %s97 = sphi 0, %s95
    %s98 = sphi 0, %s97
    %s112 = sphi 0, %s98
    %s116 = sphi 0, %s116
    %s118 = sphi 0, %s116
    %s119 = sphi 0, %s118
    %s133 = sphi 0, %s119
    %s137 = sphi 0, %s137
    %s139 = sphi 0, %s137
    %s140 = sphi 0, %s139
    %s154 = sphi 0, %s140
    %s160 = sphi 0, %s162
    %s163 = sphi 0, %s160
    %s164 = sphi 0, %s163
    %s180 = sphi 0, %s164
  $region4: #{residual_tds_conv_encoder.6} parent=0 // loop_header_branch
    %15 = sbr.rel (%p13) target = $region8
  $region5: #{residual_tds_conv_encoder.6} parent=0 // loop_body
    %s17 = ssub.s32 %s12, 1
    %s18 = ssub.s32 %s12, 2
    %s19 = sadd.s32 %s12, 1
    %s20 = ssub.s32 %s12, %s19
    %p21 = scmp.eq.s32.totalorder %s20, 0
    %s23 = sadd.s32 %s22, 1
    %s24 = scalar_select %p21, %s22, %s23
    %p27 = pneg %p21
    %p28 = scmp.eq.s32.totalorder %s12, 1
    %p29 = por %p27, %p28
    %p30 = scmp.ne.s32.totalorder %s22, %s25
    %p31 = scmp.eq.s32.totalorder %s12, 0
    %p32 = por %p30, %p31
    %p33 = scmp.ne.s32.totalorder %s22, %s25
    %p34 = scmp.eq.s32.totalorder %s17, 1
    %p35 = por %p33, %p34
    %p36 = scmp.ne.s32.totalorder %s25, %s26
    %p37 = scmp.eq.s32.totalorder %s17, 0
    %p38 = por %p36, %p37
    %p39 = scmp.ne.s32.totalorder %s25, %s26
    %p40 = scmp.eq.s32.totalorder %s18, 1
    %p41 = por %p39, %p40
    %p43 = scmp.ne.s32.totalorder %s26, %s42
    %p44 = scmp.eq.s32.totalorder %s18, 0
    %p45 = por %p43, %p44
    %s46 = sadd.s32 %s12, 1
    %s47 = sadd.s32 %s19, 1
    %s48 = ssub.s32 %s46, %s47
    %p49 = scmp.eq.s32.totalorder %s48, 0
    %s51 = sadd.s32 %s50, 1
    %s52 = scalar_select %p49, %s50, %s51
    %p55 = pneg %p49
    %p56 = scmp.eq.s32.totalorder %s12, 1
    %p57 = por %p55, %p56
    %p58 = scmp.ne.s32.totalorder %s50, %s53
    %p59 = scmp.eq.s32.totalorder %s12, 0
    %p60 = por %p58, %p59
    %p61 = scmp.ne.s32.totalorder %s50, %s53
    %p62 = scmp.eq.s32.totalorder %s17, 1
    %p63 = por %p61, %p62
    %p64 = scmp.ne.s32.totalorder %s53, %s54
    %p65 = scmp.eq.s32.totalorder %s17, 0
    %p66 = por %p64, %p65
    %p67 = scmp.ne.s32.totalorder %s53, %s54
    %p68 = scmp.eq.s32.totalorder %s18, 1
    %p69 = por %p67, %p68
    %p71 = scmp.ne.s32.totalorder %s54, %s70
    %p72 = scmp.eq.s32.totalorder %s18, 0
    %p73 = por %p71, %p72
    %s75 = sadd.s32 %s74, 1
    %p78 = scmp.eq.s32.totalorder %s12, 1
    %p79 = scmp.ne.s32.totalorder %s74, %s76
    %p80 = scmp.eq.s32.totalorder %s12, 0
    %p81 = por %p79, %p80
    %p82 = scmp.ne.s32.totalorder %s74, %s76
    %p83 = scmp.eq.s32.totalorder %s17, 1
    %p84 = por %p82, %p83
    %p85 = scmp.ne.s32.totalorder %s76, %s77
    %p86 = scmp.eq.s32.totalorder %s17, 0
    %p87 = por %p85, %p86
    %p88 = scmp.ne.s32.totalorder %s76, %s77
    %p89 = scmp.eq.s32.totalorder %s18, 1
    %p90 = por %p88, %p89
    %p92 = scmp.ne.s32.totalorder %s77, %s91
    %p93 = scmp.eq.s32.totalorder %s18, 0
    %p94 = por %p92, %p93
    %s96 = sadd.s32 %s95, 1
    %p99 = scmp.eq.s32.totalorder %s12, 1
    %p100 = scmp.ne.s32.totalorder %s95, %s97
    %p101 = scmp.eq.s32.totalorder %s12, 0
    %p102 = por %p100, %p101
    %p103 = scmp.ne.s32.totalorder %s95, %s97
    %p104 = scmp.eq.s32.totalorder %s17, 1
    %p105 = por %p103, %p104
    %p106 = scmp.ne.s32.totalorder %s97, %s98
    %p107 = scmp.eq.s32.totalorder %s17, 0
    %p108 = por %p106, %p107
    %p109 = scmp.ne.s32.totalorder %s97, %s98
    %p110 = scmp.eq.s32.totalorder %s18, 1
    %p111 = por %p109, %p110
    %p113 = scmp.ne.s32.totalorder %s98, %s112
    %p114 = scmp.eq.s32.totalorder %s18, 0
    %p115 = por %p113, %p114
    %s117 = sadd.s32 %s116, 1
    %p120 = scmp.eq.s32.totalorder %s12, 1
    %p121 = scmp.ne.s32.totalorder %s116, %s118
    %p122 = scmp.eq.s32.totalorder %s12, 0
    %p123 = por %p121, %p122
    %p124 = scmp.ne.s32.totalorder %s116, %s118
    %p125 = scmp.eq.s32.totalorder %s17, 1
    %p126 = por %p124, %p125
    %p127 = scmp.ne.s32.totalorder %s118, %s119
    %p128 = scmp.eq.s32.totalorder %s17, 0
    %p129 = por %p127, %p128
    %p130 = scmp.ne.s32.totalorder %s118, %s119
    %p131 = scmp.eq.s32.totalorder %s18, 1
    %p132 = por %p130, %p131
    %p134 = scmp.ne.s32.totalorder %s119, %s133
    %p135 = scmp.eq.s32.totalorder %s18, 0
    %p136 = por %p134, %p135
    %s138 = sadd.s32 %s137, 1
    %p141 = scmp.eq.s32.totalorder %s12, 1
    %p142 = scmp.ne.s32.totalorder %s137, %s139
    %p143 = scmp.eq.s32.totalorder %s12, 0
    %p144 = por %p142, %p143
    %p145 = scmp.ne.s32.totalorder %s137, %s139
    %p146 = scmp.eq.s32.totalorder %s17, 1
    %p147 = por %p145, %p146
    %p148 = scmp.ne.s32.totalorder %s139, %s140
    %p149 = scmp.eq.s32.totalorder %s17, 0
    %p150 = por %p148, %p149
    %p151 = scmp.ne.s32.totalorder %s139, %s140
    %p152 = scmp.eq.s32.totalorder %s18, 1
    %p153 = por %p151, %p152
    %p155 = scmp.ne.s32.totalorder %s140, %s154
    %p156 = scmp.eq.s32.totalorder %s18, 0
    %p157 = por %p155, %p156
    %s158 = ssub.s32 %s12, %s19
    %p159 = scmp.eq.s32.totalorder %s158, 0
    %s161 = sadd.s32 %s160, 1
    %s162 = scalar_select %p159, %s160, %s161
    %p165 = pneg %p159
    %p166 = scmp.eq.s32.totalorder %s12, 1
    %p167 = por %p165, %p166
    %p168 = scmp.ne.s32.totalorder %s160, %s163
    %p169 = scmp.eq.s32.totalorder %s12, 0
    %p170 = por %p168, %p169
    %p171 = scmp.ne.s32.totalorder %s160, %s163
    %p172 = scmp.eq.s32.totalorder %s17, 1
    %p173 = por %p171, %p172
    %p174 = scmp.ne.s32.totalorder %s163, %s164
    %p175 = scmp.eq.s32.totalorder %s17, 0
    %p176 = por %p174, %p175
    %p177 = scmp.ne.s32.totalorder %s163, %s164
    %p178 = scmp.eq.s32.totalorder %s18, 1
    %p179 = por %p177, %p178
    %p181 = scmp.ne.s32.totalorder %s164, %s180
    %p182 = scmp.eq.s32.totalorder %s18, 0
    %p183 = por %p181, %p182
    %p184 = scmp.le.s32.totalorder 1, %s12
    %p185 = scmp.lt.s32.totalorder %s12, 3
    %p186 = pnand %p184, %p185
    %p187 = pneg %p186
    // Predicated region
    $region9: #{residual_tds_conv_encoder.6} parent=5 // pred_check
      _
    $region10: #{residual_tds_conv_encoder.6} parent=5 // pred_check_branch
      %189 = sbr.rel (%p186) target = $region12
    $region11: #{residual_tds_conv_encoder.6} parent=5 // pred_region
      %s190 = ssub.s32 %s12, 1
      // Predicated region
      $region13: #{residual_tds_conv_encoder.6} parent=11 // pred_check
        %p191 = pneg %p87
      $region14: #{residual_tds_conv_encoder.6} parent=11 // pred_check_branch
        %193 = sbr.rel (%p191) target = $region16
      $region15: #{residual_tds_conv_encoder.6} parent=11 // pred_region
        _
      $region16: #{residual_tds_conv_encoder.6} parent=11 // pred_fallthru
        _
      // Predicated region
      $region17: #{residual_tds_conv_encoder.6} parent=11 // pred_check
        %p194 = pneg %p108
      $region18: #{residual_tds_conv_encoder.6} parent=11 // pred_check_branch
        %196 = sbr.rel (%p194) target = $region20
      $region19: #{residual_tds_conv_encoder.6} parent=11 // pred_region
        _
      $region20: #{residual_tds_conv_encoder.6} parent=11 // pred_fallthru
        _
      // Predicated region
      $region21: #{residual_tds_conv_encoder.6} parent=11 // pred_check
        %p197 = pneg %p129
      $region22: #{residual_tds_conv_encoder.6} parent=11 // pred_check_branch
        %199 = sbr.rel (%p197) target = $region24
      $region23: #{residual_tds_conv_encoder.6} parent=11 // pred_region
        _
      $region24: #{residual_tds_conv_encoder.6} parent=11 // pred_fallthru
        _
      // Predicated region
      $region25: #{residual_tds_conv_encoder.6} parent=11 // pred_check
        %p200 = pneg %p150
      $region26: #{residual_tds_conv_encoder.6} parent=11 // pred_check_branch
        %202 = sbr.rel (%p200) target = $region28
      $region27: #{residual_tds_conv_encoder.6} parent=11 // pred_region
        _
      $region28: #{residual_tds_conv_encoder.6} parent=11 // pred_fallthru
        _
    $region12: #{residual_tds_conv_encoder.6} parent=5 // pred_fallthru
      _
    %p203 = scmp.lt.s32.totalorder %s12, 2
    // Predicated region
    $region29: #{residual_tds_conv_encoder.6} parent=5 // pred_check
      %p204 = pneg %p203
    $region30: #{residual_tds_conv_encoder.6} parent=5 // pred_check_branch
      %206 = sbr.rel (%p204) target = $region32
    $region31: #{residual_tds_conv_encoder.6} parent=5 // pred_region
      // Predicated region
      $region33: #{residual_tds_conv_encoder.6} parent=31 // pred_check
        %p207 = pneg %p32
      $region34: #{residual_tds_conv_encoder.6} parent=31 // pred_check_branch
        %209 = sbr.rel (%p207) target = $region36
      $region35: #{residual_tds_conv_encoder.6} parent=31 // pred_region
        %s210 = smul.u32 5, %s12
        %p211 = scmp.lt.s32.totalorder %s210, 14
        %s212 = scalar_select %p211, %s210, 14
        %s213 = smul.addr %s212, 8
        %s214 = scalar_lea.vmem %s0, %s213
        %s215 = smul.u32 5, %s12
      $region36: #{residual_tds_conv_encoder.6} parent=31 // pred_fallthru
        _
      // Predicated region
      $region37: #{residual_tds_conv_encoder.6} parent=31 // pred_check
        %p216 = pneg %p60
      $region38: #{residual_tds_conv_encoder.6} parent=31 // pred_check_branch
        %218 = sbr.rel (%p216) target = $region40
      $region39: #{residual_tds_conv_encoder.6} parent=31 // pred_region
        %s219 = sadd.s32 %s12, 1
        %s220 = smul.u32 5, %s219
        %p221 = scmp.lt.s32.totalorder %s220, 14
        %s222 = scalar_select %p221, %s220, 14
        %s223 = smul.addr %s222, 8
        %s224 = scalar_lea.vmem %s1, %s223
        %s225 = sadd.s32 %s12, 1
        %s226 = smul.u32 5, %s225
      $region40: #{residual_tds_conv_encoder.6} parent=31 // pred_fallthru
        _
    $region32: #{residual_tds_conv_encoder.6} parent=5 // pred_fallthru
      _
    %p227 = scmp.le.s32.totalorder 1, %s12
    %p228 = scmp.lt.s32.totalorder %s12, 3
    %p229 = pnand %p227, %p228
    %p230 = pneg %p229
    // Predicated region
    $region41: #{residual_tds_conv_encoder.6} parent=5 // pred_check
      _
    $region42: #{residual_tds_conv_encoder.6} parent=5 // pred_check_branch
      %232 = sbr.rel (%p229) target = $region44
    $region43: #{residual_tds_conv_encoder.6} parent=5 // pred_region
      %s233 = ssub.s32 %s12, 1
      %s234 = smul.u32 5, %s17
      %p235 = scmp.lt.s32.totalorder %s234, 14
      %s236 = scalar_select %p235, %s234, 14
      %s237 = smul.addr %s236, 8
      %s238 = scalar_lea.vmem %s0, %s237
      %p239 = pneg %p38
      %p240 = pneg %p35
      %s241 = sadd.s32 %s17, 1
      %s242 = smul.u32 5, %s241
      %p243 = scmp.lt.s32.totalorder %s242, 14
      %s244 = scalar_select %p243, %s242, 14
      %s245 = smul.addr %s244, 8
      %s246 = scalar_lea.vmem %s1, %s245
      %p247 = pneg %p66
      %p248 = pneg %p63
      %p249 = pneg %p87
      %p250 = pneg %p84
      %p251 = pneg %p108
      %p252 = pneg %p105
      %p253 = pneg %p129
      %p254 = pneg %p126
      %p255 = pneg %p150
      %p256 = pneg %p147
      %p257 = pneg %p176
      %p258 = pneg %p173
      %s259 = smul.u32 5, %s17
      %p260 = scmp.lt.s32.totalorder %s259, 9
      %s261 = scalar_select %p260, %s259, 9
      %s262 = smul.addr %s261, 8
      %s263 = scalar_lea.vmem %s6, %s262
      %s264 = smul.u32 5, %s17
      %p265 = scmp.lt.s32.totalorder %s264, 14
      %s266 = scalar_select %p265, %s264, 14
      %s267 = smul.addr %s266, 8
      %s268 = scalar_lea.vmem %s0, %s267
      %s269 = smul.u32 5, %s17
      %s270 = sadd.s32 %s17, 1
      %s271 = smul.u32 5, %s270
      %p272 = scmp.lt.s32.totalorder %s271, 14
      %s273 = scalar_select %p272, %s271, 14
      %s274 = smul.addr %s273, 8
      %s275 = scalar_lea.vmem %s1, %s274
      %s276 = sadd.s32 %s17, 1
      %s277 = smul.u32 5, %s276
      %s278 = smul.u32 5, %s17
      %p279 = scmp.lt.s32.totalorder %s278, 9
      %s280 = scalar_select %p279, %s278, 9
      %s281 = smul.addr %s280, 8
      %s282 = scalar_lea.vmem %s6, %s281
      %s283 = smul.u32 5, %s17
      %v284 = vld [vmem:[%s268] sm:$0xff]
      %v285 = vld [vmem:[%s268 + $0x8] sm:$0xff]
      %v286 = vld [vmem:[%s268 + $0x10] sm:$0xff]
      %v287 = vld [vmem:[%s268 + $0x18] sm:$0xff]
      %v288 = vld [vmem:[%s268 + $0x20] sm:$0xff]
      %v289 = vld [vmem:[%s275] sm:$0xff]
      %v290 = vld [vmem:[%s275 + $0x8] sm:$0xff]
      %v291 = vld [vmem:[%s275 + $0x10] sm:$0xff]
      %v292 = vld [vmem:[%s2] sm:$0xff]
      %v293 = vld [vmem:[%s2 + $0x8] sm:$0xff]
      %v294 = vld [vmem:[%s2 + $0x10] sm:$0xff]
      %v295 = vld [vmem:[%s2 + $0x18] sm:$0xff]
      %v296 = vld [vmem:[%s2 + $0x20] sm:$0xff]
      %v297 = vld [vmem:[%s2 + $0x28] sm:$0xff]
      %v298 = vld [vmem:[%s2 + $0x30] sm:$0xff]
      %v299 = vld [vmem:[%s2 + $0x38] sm:$0xff]
      %v300 = vld [vmem:[%s2 + $0x40] sm:$0xff]
      %v301 = vld [vmem:[%s2 + $0x48] sm:$0xff]
      %v302 = vld [vmem:[%s2 + $0x50] sm:$0xff]
      %v303 = vld [vmem:[%s2 + $0x58] sm:$0xff]
      %v304 = vld [vmem:[%s2 + $0x60] sm:$0xff]
      %v305 = vld [vmem:[%s2 + $0x68] sm:$0xff]
      %v306 = vld [vmem:[%s2 + $0x70] sm:$0xff]
      %v307 = vld [vmem:[%s2 + $0x78] sm:$0xff]
      %v308 = vld [vmem:[%s2 + $0x80] sm:$0xff]
      %v309 = vld [vmem:[%s2 + $0x88] sm:$0xff]
      %v310 = vld [vmem:[%s2 + $0x90] sm:$0xff]
      %v311 = vld [vmem:[%s2 + $0x98] sm:$0xff]
      %v312 = vld [vmem:[%s2 + $0xa0] sm:$0xff]
      %v313 = vld [vmem:[%s2 + $0xa8] sm:$0xff]
      %v314 = vld [vmem:[%s2 + $0xb0] sm:$0xff]
      %v315 = vld [vmem:[%s2 + $0xb8] sm:$0xff]
      %v316 = vld [vmem:[%s2 + $0xc0] sm:$0xff]
      %v317 = vld [vmem:[%s2 + $0xc8] sm:$0xff]
      %v318 = vld [vmem:[%s2 + $0xd0] sm:$0xff]
      %v319 = vld [vmem:[%s2 + $0xd8] sm:$0xff]
      %v320 = vld [vmem:[%s2 + $0xe0] sm:$0xff]
      %v321 = vld [vmem:[%s2 + $0xe8] sm:$0xff]
      %v322 = vld [vmem:[%s2 + $0xf0] sm:$0xff]
      %v323 = vld [vmem:[%s2 + $0xf8] sm:$0xff]
      %324 = vmatprep.subr.mxu0 0.0
      %325 = vmatpush1.msra.mxu0 %v323
      %326 = vmatprep.subr.mxu0 0.0
      %327 = vmatpush1.msra.mxu0 %v322
      %328 = vmatprep.subr.mxu0 0.0
      %329 = vmatpush1.msra.mxu0 %v321
      %330 = vmatprep.subr.mxu0 0.0
      %331 = vmatpush1.msra.mxu0 %v320
      %332 = vmatprep.subr.mxu0 0.0
      %333 = vmatpush1.msra.mxu0 %v319
      %334 = vmatprep.subr.mxu0 0.0
      %335 = vmatpush1.msra.mxu0 %v318
      %336 = vmatprep.subr.mxu0 0.0
      %337 = vmatpush1.msra.mxu0 %v317
      %338 = vmatprep.subr.mxu0 0.0
      %339 = vmatpush1.msra.mxu0 %v316
      %340 = vmatprep.subr.mxu0 0.0
      %341 = vmatpush1.msra.mxu0 %v315
      %342 = vmatprep.subr.mxu0 0.0
      %343 = vmatpush1.msra.mxu0 %v314
      %344 = vmatprep.subr.mxu0 0.0
      %345 = vmatpush1.msra.mxu0 %v313
      %346 = vmatprep.subr.mxu0 0.0
      %347 = vmatpush1.msra.mxu0 %v312
      %348 = vmatprep.subr.mxu0 0.0
      %349 = vmatpush1.msra.mxu0 %v311
      %350 = vmatprep.subr.mxu0 0.0
      %351 = vmatpush1.msra.mxu0 %v310
      %352 = vmatprep.subr.mxu0 0.0
      %353 = vmatpush1.msra.mxu0 %v309
      %354 = vmatprep.subr.mxu0 0.0
      %355 = vmatpush1.msra.mxu0 %v308
      %356 = vmatprep.subr.mxu0 0.0
      %357 = vmatpush2.msra.mxu0 0.0
      %358 = vmatprep.subr.mxu0 0.0
      %359 = vmatpush2.msra.mxu0 0.0
      %360 = vmatprep.subr.mxu0 0.0
      %361 = vmatpush2.msra.mxu0 0.0
      %362 = vmatprep.subr.mxu0 0.0
      %363 = vmatpush2.msra.mxu0 0.0
      %364 = vmatprep.subr.mxu0 0.0
      %365 = vmatpush2.msra.mxu0 0.0
      %366 = vmatprep.subr.mxu0 0.0
      %367 = vmatpush2.msra.mxu0 0.0
      %368 = vmatprep.subr.mxu0 0.0
      %369 = vmatpush2.msra.mxu0 0.0
      %370 = vmatprep.subr.mxu0 0.0
      %371 = vmatpush2.msra.mxu0 0.0
      %372 = vmatprep.subr.mxu0 0.0
      %373 = vmatpush2.msra.mxu0 0.0
      %374 = vmatprep.subr.mxu0 0.0
      %375 = vmatpush2.msra.mxu0 0.0
      %376 = vmatprep.subr.mxu0 0.0
      %377 = vmatpush2.msra.mxu0 0.0
      %378 = vmatprep.subr.mxu0 0.0
      %379 = vmatpush2.msra.mxu0 0.0
      %380 = vmatprep.subr.mxu0 0.0
      %381 = vmatpush2.msra.mxu0 0.0
      %382 = vmatprep.subr.mxu0 0.0
      %383 = vmatpush2.msra.mxu0 0.0
      %384 = vmatprep.subr.mxu0 0.0
      %385 = vmatpush2.msra.mxu0 0.0
      %386 = vmatprep.subr.mxu0 0.0
      %387 = vmatpush2.msra.mxu0 0.0
      %388 = vmatprep.mubr.f32.mxu0 0.0
      %389 = vmatmul.mubr.f32.gmra.mxu0 %v285
      %v390 = vpop.f32.mrf.mxu0
      %v391 = vadd.f32 0.0, %v390
      %v392 = vpop.f32.mrf.mxu0
      %393 = vmatprep.mubr.f32.mxu0 0.0
      %394 = vmatmul.mubr.f32.gmra.mxu0 %v286
      %v395 = vpop.f32.mrf.mxu0
      %v396 = vadd.f32 0.0, %v395
      %v397 = vpop.f32.mrf.mxu0
      %398 = vmatprep.mubr.f32.mxu0 0.0
      %399 = vmatmul.mubr.f32.gmra.mxu0 %v287
      %v400 = vpop.f32.mrf.mxu0
      %v401 = vadd.f32 0.0, %v400
      %v402 = vpop.f32.mrf.mxu0
      %403 = vmatprep.mubr.f32.mxu0 0.0
      %404 = vmatmul.mubr.f32.gmra.mxu0 %v288
      %v405 = vpop.f32.mrf.mxu0
      %v406 = vadd.f32 0.0, %v405
      %v407 = vpop.f32.mrf.mxu0
      %408 = vmatprep.mubr.f32.mxu0 0.0
      %409 = vmatmul.mubr.f32.gmra.mxu0 %v289
      %v410 = vpop.f32.mrf.mxu0
      %v411 = vadd.f32 0.0, %v410
      %v412 = vpop.f32.mrf.mxu0
      %413 = vdwg.mxu0
      %414 = vmatprep.subr.mxu0 0.0
      %415 = vmatpush1.msra.mxu0 %v307
      %416 = vmatprep.subr.mxu0 0.0
      %417 = vmatpush1.msra.mxu0 %v306
      %418 = vmatprep.subr.mxu0 0.0
      %419 = vmatpush1.msra.mxu0 %v305
      %420 = vmatprep.subr.mxu0 0.0
      %421 = vmatpush1.msra.mxu0 %v304
      %422 = vmatprep.subr.mxu0 0.0
      %423 = vmatpush1.msra.mxu0 %v303
      %424 = vmatprep.subr.mxu0 0.0
      %425 = vmatpush1.msra.mxu0 %v302
      %426 = vmatprep.subr.mxu0 0.0
      %427 = vmatpush1.msra.mxu0 %v301
      %428 = vmatprep.subr.mxu0 0.0
      %429 = vmatpush1.msra.mxu0 %v300
      %430 = vmatprep.subr.mxu0 0.0
      %431 = vmatpush1.msra.mxu0 %v299
      %432 = vmatprep.subr.mxu0 0.0
      %433 = vmatpush1.msra.mxu0 %v298
      %434 = vmatprep.subr.mxu0 0.0
      %435 = vmatpush1.msra.mxu0 %v297
      %436 = vmatprep.subr.mxu0 0.0
      %437 = vmatpush1.msra.mxu0 %v296
      %438 = vmatprep.subr.mxu0 0.0
      %439 = vmatpush1.msra.mxu0 %v295
      %440 = vmatprep.subr.mxu0 0.0
      %441 = vmatpush1.msra.mxu0 %v294
      %442 = vmatprep.subr.mxu0 0.0
      %443 = vmatpush1.msra.mxu0 %v293
      %444 = vmatprep.subr.mxu0 0.0
      %445 = vmatpush1.msra.mxu0 %v292
      %446 = vmatprep.subr.mxu0 0.0
      %447 = vmatpush2.msra.mxu0 0.0
      %448 = vmatprep.subr.mxu0 0.0
      %449 = vmatpush2.msra.mxu0 0.0
      %450 = vmatprep.subr.mxu0 0.0
      %451 = vmatpush2.msra.mxu0 0.0
      %452 = vmatprep.subr.mxu0 0.0
      %453 = vmatpush2.msra.mxu0 0.0
      %454 = vmatprep.subr.mxu0 0.0
      %455 = vmatpush2.msra.mxu0 0.0
      %456 = vmatprep.subr.mxu0 0.0
      %457 = vmatpush2.msra.mxu0 0.0
      %458 = vmatprep.subr.mxu0 0.0
      %459 = vmatpush2.msra.mxu0 0.0
      %460 = vmatprep.subr.mxu0 0.0
      %461 = vmatpush2.msra.mxu0 0.0
      %462 = vmatprep.subr.mxu0 0.0
      %463 = vmatpush2.msra.mxu0 0.0
      %464 = vmatprep.subr.mxu0 0.0
      %465 = vmatpush2.msra.mxu0 0.0
      %466 = vmatprep.subr.mxu0 0.0
      %467 = vmatpush2.msra.mxu0 0.0
      %468 = vmatprep.subr.mxu0 0.0
      %469 = vmatpush2.msra.mxu0 0.0
      %470 = vmatprep.subr.mxu0 0.0
      %471 = vmatpush2.msra.mxu0 0.0
      %472 = vmatprep.subr.mxu0 0.0
      %473 = vmatpush2.msra.mxu0 0.0
      %474 = vmatprep.subr.mxu0 0.0
      %475 = vmatpush2.msra.mxu0 0.0
      %476 = vmatprep.subr.mxu0 0.0
      %477 = vmatpush2.msra.mxu0 0.0
      %478 = vmatprep.mubr.f32.mxu0 0.0
      %479 = vmatmul.mubr.f32.gmra.mxu0 %v284
      %v480 = vpop.f32.mrf.mxu0
      %v481 = vadd.f32 %v391, %v480
      %v482 = vpop.f32.mrf.mxu0
      %483 = vmatprep.mubr.f32.mxu0 0.0
      %484 = vmatmul.mubr.f32.gmra.mxu0 %v285
      %v485 = vpop.f32.mrf.mxu0
      %v486 = vadd.f32 %v396, %v485
      %v487 = vpop.f32.mrf.mxu0
      %488 = vmatprep.mubr.f32.mxu0 0.0
      %489 = vmatmul.mubr.f32.gmra.mxu0 %v286
      %v490 = vpop.f32.mrf.mxu0
      %v491 = vadd.f32 %v401, %v490
      %v492 = vpop.f32.mrf.mxu0
      %493 = vmatprep.mubr.f32.mxu0 0.0
      %494 = vmatmul.mubr.f32.gmra.mxu0 %v287
      %v495 = vpop.f32.mrf.mxu0
      %v496 = vadd.f32 %v406, %v495
      %v497 = vpop.f32.mrf.mxu0
      %498 = vmatprep.mubr.f32.mxu0 0.0
      %499 = vmatmul.mubr.f32.gmra.mxu0 %v288
      %v500 = vpop.f32.mrf.mxu0
      %v501 = vadd.f32 %v411, %v500
      %v502 = vpop.f32.mrf.mxu0
      %503 = vdwg.mxu0
      %v504 = vmax.f32 %v284, %v285
      %v505 = vmax.f32 %v285, %v286
      %v506 = vmax.f32 %v286, %v287
      %v507 = vmax.f32 %v287, %v288
      %v508 = vmax.f32 %v288, %v289
      %v509 = vld [vmem:[%s2 + $0x100] sm:$0xff]
      %v510 = vld [vmem:[%s2 + $0x108] sm:$0xff]
      %v511 = vld [vmem:[%s2 + $0x110] sm:$0xff]
      %v512 = vld [vmem:[%s2 + $0x118] sm:$0xff]
      %v513 = vld [vmem:[%s2 + $0x120] sm:$0xff]
      %v514 = vld [vmem:[%s2 + $0x128] sm:$0xff]
      %v515 = vld [vmem:[%s2 + $0x130] sm:$0xff]
      %v516 = vld [vmem:[%s2 + $0x138] sm:$0xff]
      %v517 = vld [vmem:[%s2 + $0x140] sm:$0xff]
      %v518 = vld [vmem:[%s2 + $0x148] sm:$0xff]
      %v519 = vld [vmem:[%s2 + $0x150] sm:$0xff]
      %v520 = vld [vmem:[%s2 + $0x158] sm:$0xff]
      %v521 = vld [vmem:[%s2 + $0x160] sm:$0xff]
      %v522 = vld [vmem:[%s2 + $0x168] sm:$0xff]
      %v523 = vld [vmem:[%s2 + $0x170] sm:$0xff]
      %v524 = vld [vmem:[%s2 + $0x178] sm:$0xff]
      %525 = vmatprep.subr.mxu0 0.0
      %526 = vmatpush1.msra.mxu0 %v524
      %527 = vmatprep.subr.mxu0 0.0
      %528 = vmatpush1.msra.mxu0 %v523
      %529 = vmatprep.subr.mxu0 0.0
      %530 = vmatpush1.msra.mxu0 %v522
      %531 = vmatprep.subr.mxu0 0.0
      %532 = vmatpush1.msra.mxu0 %v521
      %533 = vmatprep.subr.mxu0 0.0
      %534 = vmatpush1.msra.mxu0 %v520
      %535 = vmatprep.subr.mxu0 0.0
      %536 = vmatpush1.msra.mxu0 %v519
      %537 = vmatprep.subr.mxu0 0.0
      %538 = vmatpush1.msra.mxu0 %v518
      %539 = vmatprep.subr.mxu0 0.0
      %540 = vmatpush1.msra.mxu0 %v517
      %541 = vmatprep.subr.mxu0 0.0
      %542 = vmatpush1.msra.mxu0 %v516
      %543 = vmatprep.subr.mxu0 0.0
      %544 = vmatpush1.msra.mxu0 %v515
      %545 = vmatprep.subr.mxu0 0.0
      %546 = vmatpush1.msra.mxu0 %v514
      %547 = vmatprep.subr.mxu0 0.0
      %548 = vmatpush1.msra.mxu0 %v513
      %549 = vmatprep.subr.mxu0 0.0
      %550 = vmatpush1.msra.mxu0 %v512
      %551 = vmatprep.subr.mxu0 0.0
      %552 = vmatpush1.msra.mxu0 %v511
      %553 = vmatprep.subr.mxu0 0.0
      %554 = vmatpush1.msra.mxu0 %v510
      %555 = vmatprep.subr.mxu0 0.0
      %556 = vmatpush1.msra.mxu0 %v509
      %557 = vmatprep.subr.mxu0 0.0
      %558 = vmatpush2.msra.mxu0 0.0
      %559 = vmatprep.subr.mxu0 0.0
      %560 = vmatpush2.msra.mxu0 0.0
      %561 = vmatprep.subr.mxu0 0.0
      %562 = vmatpush2.msra.mxu0 0.0
      %563 = vmatprep.subr.mxu0 0.0
      %564 = vmatpush2.msra.mxu0 0.0
      %565 = vmatprep.subr.mxu0 0.0
      %566 = vmatpush2.msra.mxu0 0.0
      %567 = vmatprep.subr.mxu0 0.0
      %568 = vmatpush2.msra.mxu0 0.0
      %569 = vmatprep.subr.mxu0 0.0
      %570 = vmatpush2.msra.mxu0 0.0
      %571 = vmatprep.subr.mxu0 0.0
      %572 = vmatpush2.msra.mxu0 0.0
      %573 = vmatprep.subr.mxu0 0.0
      %574 = vmatpush2.msra.mxu0 0.0
      %575 = vmatprep.subr.mxu0 0.0
      %576 = vmatpush2.msra.mxu0 0.0
      %577 = vmatprep.subr.mxu0 0.0
      %578 = vmatpush2.msra.mxu0 0.0
      %579 = vmatprep.subr.mxu0 0.0
      %580 = vmatpush2.msra.mxu0 0.0
      %581 = vmatprep.subr.mxu0 0.0
      %582 = vmatpush2.msra.mxu0 0.0
      %583 = vmatprep.subr.mxu0 0.0
      %584 = vmatpush2.msra.mxu0 0.0
      %585 = vmatprep.subr.mxu0 0.0
      %586 = vmatpush2.msra.mxu0 0.0
      %587 = vmatprep.subr.mxu0 0.0
      %588 = vmatpush2.msra.mxu0 0.0
      %589 = vmatprep.mubr.f32.mxu0 0.0
      %590 = vmatmul.mubr.f32.gmra.mxu0 %v286
      %v591 = vpop.f32.mrf.mxu0
      %v592 = vadd.f32 0.0, %v591
      %v593 = vpop.f32.mrf.mxu0
      %594 = vmatprep.mubr.f32.mxu0 0.0
      %595 = vmatmul.mubr.f32.gmra.mxu0 %v287
      %v596 = vpop.f32.mrf.mxu0
      %v597 = vadd.f32 0.0, %v596
      %v598 = vpop.f32.mrf.mxu0
      %599 = vmatprep.mubr.f32.mxu0 0.0
      %600 = vmatmul.mubr.f32.gmra.mxu0 %v288
      %v601 = vpop.f32.mrf.mxu0
      %v602 = vadd.f32 0.0, %v601
      %v603 = vpop.f32.mrf.mxu0
      %604 = vmatprep.mubr.f32.mxu0 0.0
      %605 = vmatmul.mubr.f32.gmra.mxu0 %v289
      %v606 = vpop.f32.mrf.mxu0
      %v607 = vadd.f32 0.0, %v606
      %v608 = vpop.f32.mrf.mxu0
      %609 = vmatprep.mubr.f32.mxu0 0.0
      %610 = vmatmul.mubr.f32.gmra.mxu0 %v290
      %v611 = vpop.f32.mrf.mxu0
      %v612 = vadd.f32 0.0, %v611
      %v613 = vpop.f32.mrf.mxu0
      %614 = vdwg.mxu0
      %v615 = vadd.f32 %v481, %v592
      %v616 = vadd.f32 %v486, %v597
      %v617 = vadd.f32 %v491, %v602
      %v618 = vadd.f32 %v496, %v607
      %v619 = vadd.f32 %v501, %v612
      %v620 = vmax.f32 %v504, %v286
      %v621 = vmax.f32 %v505, %v287
      %v622 = vmax.f32 %v506, %v288
      %v623 = vmax.f32 %v507, %v289
      %v624 = vmax.f32 %v508, %v290
      %v625 = vld [vmem:[%s2 + $0x180] sm:$0xff]
      %v626 = vld [vmem:[%s2 + $0x188] sm:$0xff]
      %v627 = vld [vmem:[%s2 + $0x190] sm:$0xff]
      %v628 = vld [vmem:[%s2 + $0x198] sm:$0xff]
      %v629 = vld [vmem:[%s2 + $0x1a0] sm:$0xff]
      %v630 = vld [vmem:[%s2 + $0x1a8] sm:$0xff]
      %v631 = vld [vmem:[%s2 + $0x1b0] sm:$0xff]
      %v632 = vld [vmem:[%s2 + $0x1b8] sm:$0xff]
      %v633 = vld [vmem:[%s2 + $0x1c0] sm:$0xff]
      %v634 = vld [vmem:[%s2 + $0x1c8] sm:$0xff]
      %v635 = vld [vmem:[%s2 + $0x1d0] sm:$0xff]
      %v636 = vld [vmem:[%s2 + $0x1d8] sm:$0xff]
      %v637 = vld [vmem:[%s2 + $0x1e0] sm:$0xff]
      %v638 = vld [vmem:[%s2 + $0x1e8] sm:$0xff]
      %v639 = vld [vmem:[%s2 + $0x1f0] sm:$0xff]
      %v640 = vld [vmem:[%s2 + $0x1f8] sm:$0xff]
      %641 = vmatprep.subr.mxu0 0.0
      %642 = vmatpush1.msra.mxu0 %v640
      %643 = vmatprep.subr.mxu0 0.0
      %644 = vmatpush1.msra.mxu0 %v639
      %645 = vmatprep.subr.mxu0 0.0
      %646 = vmatpush1.msra.mxu0 %v638
      %647 = vmatprep.subr.mxu0 0.0
      %648 = vmatpush1.msra.mxu0 %v637
      %649 = vmatprep.subr.mxu0 0.0
      %650 = vmatpush1.msra.mxu0 %v636
      %651 = vmatprep.subr.mxu0 0.0
      %652 = vmatpush1.msra.mxu0 %v635
      %653 = vmatprep.subr.mxu0 0.0
      %654 = vmatpush1.msra.mxu0 %v634
      %655 = vmatprep.subr.mxu0 0.0
      %656 = vmatpush1.msra.mxu0 %v633
      %657 = vmatprep.subr.mxu0 0.0
      %658 = vmatpush1.msra.mxu0 %v632
      %659 = vmatprep.subr.mxu0 0.0
      %660 = vmatpush1.msra.mxu0 %v631
      %661 = vmatprep.subr.mxu0 0.0
      %662 = vmatpush1.msra.mxu0 %v630
      %663 = vmatprep.subr.mxu0 0.0
      %664 = vmatpush1.msra.mxu0 %v629
      %665 = vmatprep.subr.mxu0 0.0
      %666 = vmatpush1.msra.mxu0 %v628
      %667 = vmatprep.subr.mxu0 0.0
      %668 = vmatpush1.msra.mxu0 %v627
      %669 = vmatprep.subr.mxu0 0.0
      %670 = vmatpush1.msra.mxu0 %v626
      %671 = vmatprep.subr.mxu0 0.0
      %672 = vmatpush1.msra.mxu0 %v625
      %673 = vmatprep.subr.mxu0 0.0
      %674 = vmatpush2.msra.mxu0 0.0
      %675 = vmatprep.subr.mxu0 0.0
      %676 = vmatpush2.msra.mxu0 0.0
      %677 = vmatprep.subr.mxu0 0.0
      %678 = vmatpush2.msra.mxu0 0.0
      %679 = vmatprep.subr.mxu0 0.0
      %680 = vmatpush2.msra.mxu0 0.0
      %681 = vmatprep.subr.mxu0 0.0
      %682 = vmatpush2.msra.mxu0 0.0
      %683 = vmatprep.subr.mxu0 0.0
      %684 = vmatpush2.msra.mxu0 0.0
      %685 = vmatprep.subr.mxu0 0.0
      %686 = vmatpush2.msra.mxu0 0.0
      %687 = vmatprep.subr.mxu0 0.0
      %688 = vmatpush2.msra.mxu0 0.0
      %689 = vmatprep.subr.mxu0 0.0
      %690 = vmatpush2.msra.mxu0 0.0
      %691 = vmatprep.subr.mxu0 0.0
      %692 = vmatpush2.msra.mxu0 0.0
      %693 = vmatprep.subr.mxu0 0.0
      %694 = vmatpush2.msra.mxu0 0.0
      %695 = vmatprep.subr.mxu0 0.0
      %696 = vmatpush2.msra.mxu0 0.0
      %697 = vmatprep.subr.mxu0 0.0
      %698 = vmatpush2.msra.mxu0 0.0
      %699 = vmatprep.subr.mxu0 0.0
      %700 = vmatpush2.msra.mxu0 0.0
      %701 = vmatprep.subr.mxu0 0.0
      %702 = vmatpush2.msra.mxu0 0.0
      %703 = vmatprep.subr.mxu0 0.0
      %704 = vmatpush2.msra.mxu0 0.0
      %705 = vmatprep.mubr.f32.mxu0 0.0
      %706 = vmatmul.mubr.f32.gmra.mxu0 %v287
      %v707 = vpop.f32.mrf.mxu0
      %v708 = vadd.f32 0.0, %v707
      %v709 = vpop.f32.mrf.mxu0
      %710 = vmatprep.mubr.f32.mxu0 0.0
      %711 = vmatmul.mubr.f32.gmra.mxu0 %v288
      %v712 = vpop.f32.mrf.mxu0
      %v713 = vadd.f32 0.0, %v712
      %v714 = vpop.f32.mrf.mxu0
      %715 = vmatprep.mubr.f32.mxu0 0.0
      %716 = vmatmul.mubr.f32.gmra.mxu0 %v289
      %v717 = vpop.f32.mrf.mxu0
      %v718 = vadd.f32 0.0, %v717
      %v719 = vpop.f32.mrf.mxu0
      %720 = vmatprep.mubr.f32.mxu0 0.0
      %721 = vmatmul.mubr.f32.gmra.mxu0 %v290
      %v722 = vpop.f32.mrf.mxu0
      %v723 = vadd.f32 0.0, %v722
      %v724 = vpop.f32.mrf.mxu0
      %725 = vmatprep.mubr.f32.mxu0 0.0
      %726 = vmatmul.mubr.f32.gmra.mxu0 %v291
      %v727 = vpop.f32.mrf.mxu0
      %v728 = vadd.f32 0.0, %v727
      %v729 = vpop.f32.mrf.mxu0
      %730 = vdwg.mxu0
      %v731 = vadd.f32 %v615, %v708
      %v732 = vadd.f32 %v616, %v713
      %v733 = vadd.f32 %v617, %v718
      %v734 = vadd.f32 %v618, %v723
      %v735 = vadd.f32 %v619, %v728
      %v736 = vmax.f32 %v620, %v287
      %v737 = vmax.f32 %v621, %v288
      %v738 = vmax.f32 %v622, %v289
      %v739 = vmax.f32 %v623, %v290
      %v740 = vmax.f32 %v624, %v291
      %v741 = vld [vmem:[%s3] sm:$0x1]
      %v743 = vlaneseq
      %v744 = vshrl.u32 %v743, 7
      %v745 = vsub.s32 0, %v744
      %v746 = vrot.slane %v741, %v745
      %v748 = vadd.f32 %v731, %v746
      %v749 = vadd.f32 %v732, %v746
      %v750 = vadd.f32 %v733, %v746
      %v751 = vadd.f32 %v734, %v746
      %v752 = vadd.f32 %v735, %v746
      %v753 = vmax.f32 %v748, 0.0
      %v754 = vmax.f32 %v749, 0.0
      %v755 = vmax.f32 %v750, 0.0
      %v756 = vmax.f32 %v751, 0.0
      %v757 = vmax.f32 %v752, 0.0
      %v758 = vadd.f32 %v753, %v736
      %v759 = vadd.f32 %v754, %v737
      %v760 = vadd.f32 %v755, %v738
      %v761 = vadd.f32 %v756, %v739
      %v762 = vadd.f32 %v757, %v740
      %v763 = vadd.f32 %v758, %v287
      %v764 = vadd.f32 %v759, %v288
      %v765 = vadd.f32 %v760, %v289
      %v766 = vadd.f32 %v761, %v290
      %v767 = vadd.f32 %v762, %v291
      %768 = vadd.xlane.f32.xlu0 %v763
      %v769 = vpop.xlane.xlu0 %768
      %770 = vadd.xlane.f32.xlu0 %v764
      %v771 = vpop.xlane.xlu0 %770
      %772 = vadd.xlane.f32.xlu0 %v765
      %v773 = vpop.xlane.xlu0 %772
      %774 = vadd.xlane.f32.xlu0 %v766
      %v775 = vpop.xlane.xlu0 %774
      %776 = vadd.xlane.f32.xlu0 %v767
      %v777 = vpop.xlane.xlu0 %776
      %v778 = vrcp.pop 128.0
      %v779 = vmul.f32 %v769, %v778
      %v780 = vmul.f32 %v771, %v778
      %v781 = vmul.f32 %v773, %v778
      %v782 = vmul.f32 %v775, %v778
      %v783 = vmul.f32 %v777, %v778
      %v784 = vsub.f32 %v763, %v779
      %v785 = vsub.f32 %v764, %v780
      %v786 = vsub.f32 %v765, %v781
      %v787 = vsub.f32 %v766, %v782
      %v788 = vsub.f32 %v767, %v783
      %v789 = vmul.f32 %v784, %v784
      %v790 = vmul.f32 %v785, %v785
      %v791 = vmul.f32 %v786, %v786
      %v792 = vmul.f32 %v787, %v787
      %v793 = vmul.f32 %v788, %v788
      %794 = vadd.xlane.f32.xlu0 %v789
      %v795 = vpop.xlane.xlu0 %794
      %796 = vadd.xlane.f32.xlu0 %v790
      %v797 = vpop.xlane.xlu0 %796
      %798 = vadd.xlane.f32.xlu0 %v791
      %v799 = vpop.xlane.xlu0 %798
      %800 = vadd.xlane.f32.xlu0 %v792
      %v801 = vpop.xlane.xlu0 %800
      %802 = vadd.xlane.f32.xlu0 %v793
      %v803 = vpop.xlane.xlu0 %802
      %v804 = vmul.f32 %v795, %v778
      %v805 = vmul.f32 %v797, %v778
      %v806 = vmul.f32 %v799, %v778
      %v807 = vmul.f32 %v801, %v778
      %v808 = vmul.f32 %v803, %v778
      %v809 = vadd.f32 %v804, 1e-05
      %v810 = vadd.f32 %v805, 1e-05
      %v811 = vadd.f32 %v806, 1e-05
      %v812 = vadd.f32 %v807, 1e-05
      %v813 = vadd.f32 %v808, 1e-05
      %v814 = vrsqrt.pop %v809
      %v815 = vrsqrt.pop %v810
      %v816 = vrsqrt.pop %v811
      %v817 = vrsqrt.pop %v812
      %v818 = vrsqrt.pop %v813
      %v819 = vmul.f32 %v784, %v814
      %v820 = vmul.f32 %v785, %v815
      %v821 = vmul.f32 %v786, %v816
      %v822 = vmul.f32 %v787, %v817
      %v823 = vmul.f32 %v788, %v818
      %v824 = vld [vmem:[%s4] sm:$0x1]
      %v826 = vlaneseq
      %v827 = vshrl.u32 %v826, 7
      %v828 = vsub.s32 0, %v827
      %v829 = vrot.slane %v824, %v828
      %v831 = vmul.f32 %v819, %v829
      %v832 = vmul.f32 %v820, %v829
      %v833 = vmul.f32 %v821, %v829
      %v834 = vmul.f32 %v822, %v829
      %v835 = vmul.f32 %v823, %v829
      %v836 = vld [vmem:[%s5] sm:$0x1]
      %v838 = vlaneseq
      %v839 = vshrl.u32 %v838, 7
      %v840 = vsub.s32 0, %v839
      %v841 = vrot.slane %v836, %v840
      %v843 = vadd.f32 %v831, %v841
      %v844 = vadd.f32 %v832, %v841
      %v845 = vadd.f32 %v833, %v841
      %v846 = vadd.f32 %v834, %v841
      %v847 = vadd.f32 %v835, %v841
      %848 = vst [vmem:[%s282] sm:$0xff] %v843
      %849 = vst [vmem:[%s282 + $0x8] sm:$0xff] %v844
      %850 = vst [vmem:[%s282 + $0x10] sm:$0xff] %v845
      %851 = vst [vmem:[%s282 + $0x18] sm:$0xff] %v846
      %852 = vst [vmem:[%s282 + $0x20] sm:$0xff] %v847
      %s853 = smul.u32 5, %s17
      %p854 = scmp.lt.s32.totalorder %s853, 9
      %s855 = scalar_select %p854, %s853, 9
      %s856 = smul.addr %s855, 8
      %s857 = scalar_lea.vmem %s6, %s856
      // Predicated region
      $region45: #{residual_tds_conv_encoder.6} parent=43 // pred_check
        %p858 = pneg %p173
      $region46: #{residual_tds_conv_encoder.6} parent=43 // pred_check_branch
        %860 = sbr.rel (%p858) target = $region48
      $region47: #{residual_tds_conv_encoder.6} parent=43 // pred_region
        %s861 = smul.u32 5, %s17
      $region48: #{residual_tds_conv_encoder.6} parent=43 // pred_fallthru
        _
    $region44: #{residual_tds_conv_encoder.6} parent=5 // pred_fallthru
      _
    %p862 = scmp.le.s32.totalorder 2, %s12
    // Predicated region
    $region49: #{residual_tds_conv_encoder.6} parent=5 // pred_check
      %p863 = pneg %p862
    $region50: #{residual_tds_conv_encoder.6} parent=5 // pred_check_branch
      %865 = sbr.rel (%p863) target = $region52
    $region51: #{residual_tds_conv_encoder.6} parent=5 // pred_region
      %s866 = ssub.s32 %s12, 2
      // Predicated region
      $region53: #{residual_tds_conv_encoder.6} parent=51 // pred_check
        %p867 = pneg %p179
      $region54: #{residual_tds_conv_encoder.6} parent=51 // pred_check_branch
        %869 = sbr.rel (%p867) target = $region56
      $region55: #{residual_tds_conv_encoder.6} parent=51 // pred_region
        %s870 = smul.u32 5, %s18
        %p871 = scmp.lt.s32.totalorder %s870, 9
        %s872 = scalar_select %p871, %s870, 9
        %s873 = smul.addr %s872, 8
        %s874 = scalar_lea.vmem %s6, %s873
      $region56: #{residual_tds_conv_encoder.6} parent=51 // pred_fallthru
        _
    $region52: #{residual_tds_conv_encoder.6} parent=5 // pred_fallthru
      _
  $region6: #{residual_tds_conv_encoder.6} parent=0 // loop_footer
    %s16 = sadd.s32 1, %s12
  $region7: #{residual_tds_conv_encoder.6} parent=0 // loop_footer_branch
    %11 = sbr.rel target = $region3
  $region8: #{residual_tds_conv_encoder.6} parent=0 // loop_exit
    _

</llo_original>
